<compile_context>
chip_gen: v5e
topology: v5e:2x2
jax: 0.10.0
libtpu: 0.0.40
codegen_flags: <defaults>
</compile_context>

<pallas_src>
import numpy as np
import jax
import jax.numpy as jnp
from jax.experimental import pallas as pl
from jax.experimental.pallas import tpu as pltpu


def _vmem():
    return pl.BlockSpec(memory_space=pltpu.MemorySpace.VMEM)


# --------------------------- Kernel 1: fused CNN stack ---------------------------
def _make_cnn_kernel(width, oc1, oc2):
    half1 = (width // 2) * oc1          # lane offset of the odd-w half after conv1
    half2 = (width // 4) * oc2          # lane offset of the odd-w half after conv2

    def kernel(x_ref, band1_ref, bias1_ref, scale1_ref, shift1_ref,
               band2_ref, bias2_ref, scale2_ref, shift2_ref, o_ref):
        # conv1 (banded matmul, bf16 weights, f32 accumulate) -> bias -> ReLU -> BN(eval)
        x = x_ref[...].astype(jnp.bfloat16)                       # (B*T, width*IC1)
        y = jnp.dot(x, band1_ref[...], preferred_element_type=jnp.float32)
        y = jnp.maximum(y + bias1_ref[...], 0.0)                  # Conv -> ReLU (per Sequential)
        z = y * scale1_ref[...] + shift1_ref[...]                 # BatchNorm2d (eval), after ReLU
        # MaxPool2d((1,2)): band columns are ordered even-w then odd-w, so the pool
        # is a single full-vreg max of the two 128-aligned halves.
        p1 = jnp.maximum(z[:, :half1], z[:, half1:])              # (B*T, w/2 * oc1)
        # TODO(synk): nn.Dropout omitted (inference / eval mode; identity).
        # conv2 -> bias -> ReLU -> BN(eval) -> aligned MaxPool
        y = jnp.dot(p1.astype(jnp.bfloat16), band2_ref[...],
                    preferred_element_type=jnp.float32)
        y = jnp.maximum(y + bias2_ref[...], 0.0)
        z = y * scale2_ref[...] + shift2_ref[...]
        o_ref[...] = jnp.maximum(z[:, :half2], z[:, half2:])      # (B*T, w/4 * oc2)

    return kernel


def _cnn_forward(x2d, prep, width, oc1, oc2):
    bt = x2d.shape[0]
    args = (x2d, prep["band1"], prep["bias1"], prep["scale1"], prep["shift1"],
            prep["band2"], prep["bias2"], prep["scale2"], prep["shift2"])
    return pl.pallas_call(
        _make_cnn_kernel(width, oc1, oc2),
        out_shape=jax.ShapeDtypeStruct((bt, (width // 4) * oc2), jnp.float32),
        in_specs=[_vmem()] * len(args),
        out_specs=_vmem(),
    )(*args)          # columns ordered (pooled_w, channel), channel fastest


# --------------------- Kernel 2: fused LSTM stack + Linear ---------------------
def _make_lstm_fc_kernel(seq_len, bp, hidden, n_layers):
    h4 = 4 * hidden

    def kernel(*refs):
        seq_ref = refs[0]
        fcw_ref = refs[1 + 3 * n_layers]
        fcb_ref = refs[2 + 3 * n_layers]
        o_ref = refs[3 + 3 * n_layers]
        hseq_ref = refs[4 + 3 * n_layers]                         # VMEM scratch (T*bp, H)

        lane = jax.lax.broadcasted_iota(jnp.int32, (bp, h4), 1)
        is_g = (lane >= 2 * hidden) & (lane < 3 * hidden)         # hoisted gate mask

        fc_pieces = []
        for layer in range(n_layers):
            wih = refs[1 + 3 * layer][...]                        # (D_in, 4H) bf16
            whh = refs[2 + 3 * layer][...]                        # (H, 4H)    bf16
            bias = refs[3 + 3 * layer][...]                       # (1, 4H)    f32
            seq = seq_ref[...] if layer == 0 else hseq_ref[...]   # (T*bp, D_in) padded slabs
            # Hoisted input projection: one matmul per layer, f32 accumulate.
            gx = jnp.dot(seq.astype(jnp.bfloat16), wih,
                         preferred_element_type=jnp.float32) + bias
            h = jnp.zeros((bp, hidden), jnp.float32)
            c = jnp.zeros((bp, hidden), jnp.float32)
            last = layer == n_layers - 1
            for t in range(seq_len):                              # fully unrolled, static t
                # tile-aligned (8-row) slab slice; i,f,g,o gate order (PyTorch)
                gates = gx[t * bp:(t + 1) * bp, :] + jnp.dot(
                    h.astype(jnp.bfloat16), whh, preferred_element_type=jnp.float32)
                # Single EUP pass: sigma(x) = 0.5*tanh(x/2)+0.5; g-lanes use tanh directly.
                pre = jnp.where(is_g, gates, 0.5 * gates)
                y = jnp.tanh(pre)
                act = jnp.where(is_g, y, 0.5 * y + 0.5)
                i_g = act[:, 0:hidden]
                f_g = act[:, hidden:2 * hidden]
                g_g = act[:, 2 * hidden:3 * hidden]
                o_g = act[:, 3 * hidden:4 * hidden]
                c = f_g * c + i_g * g_g
                h = o_g * jnp.tanh(c)
                if last:
                    # Linear(H,1) as VPU mul + lane reduce (no N=1 MXU pass).
                    fc_pieces.append(jnp.sum(h * fcw_ref[...], axis=-1, keepdims=True))
                else:
                    hseq_ref[t * bp:(t + 1) * bp, :] = h          # aligned slab store
            # TODO(synk): inter-layer LSTM dropout omitted (eval mode; identity).
        o_ref[...] = jnp.concatenate(fc_pieces, axis=1) + fcb_ref[...]   # (bp, T)

    return kernel


def _lstm_fc_forward(feats_pad, lstm_prep, fc_w, fc_b, seq_len, bp):
    hidden = fc_w.shape[1]
    n_layers = len(lstm_prep)
    args = [feats_pad]
    for (wih_t, whh_t, bias) in lstm_prep:
        args += [wih_t, whh_t, bias]
    args += [fc_w, fc_b]
    return pl.pallas_call(
        _make_lstm_fc_kernel(seq_len, bp, hidden, n_layers),
        out_shape=jax.ShapeDtypeStruct((bp, seq_len), jnp.float32),
        in_specs=[_vmem()] * len(args),
        out_specs=_vmem(),
        scratch_shapes=[pltpu.VMEM((seq_len * bp, hidden), jnp.float32)],
    )(*args)


# ------------------------ One-time weight preparation (no jit) ------------------------
def _band_matrix_np(w, width):
    """Conv2d kernel (1,3), padding (0,1) along `width` as one banded matmul.

    Rows: (pos, ic) ic-fastest.  Columns: width blocks of oc, ordered even
    positions first then odd positions, so MaxPool2d((1,2)) becomes
    max(left half, right half) on 128-aligned lane halves.
    """
    w = np.asarray(w, dtype=np.float32)
    oc, ic = w.shape[0], w.shape[1]
    order = list(range(0, width, 2)) + list(range(1, width, 2))
    band = np.zeros((width * ic, width * oc), dtype=np.float32)
    for blk, wo in enumerate(order):
        for j in range(3):
            ci = wo + j - 1
            if 0 <= ci < width:
                band[ci * ic:(ci + 1) * ic, blk * oc:(blk + 1) * oc] = w[:, :, 0, j].T
    return band


def prepare_params(params, width, eps=1e-5):
    """Done ONCE outside jit: banded conv weights (bf16), folded eval BatchNorm,
    transposed + bf16 LSTM weights, fc row vector.  Hot path sees only arrays."""
    def tile(v, n):
        return jnp.asarray(np.tile(np.asarray(v, np.float32), n).reshape(1, -1))

    def conv_block(conv, w_len):
        w, b, g, be, m, v = (np.asarray(a, np.float32) for a in conv)
        s = g / np.sqrt(v + eps)
        return {
            "band": jnp.asarray(_band_matrix_np(w, w_len), dtype=jnp.bfloat16),
            "bias": tile(b, w_len),
            "scale": tile(s, w_len),
            "shift": tile(be - m * s, w_len),
        }

    c1 = conv_block(params["conv1"], width)
    c2 = conv_block(params["conv2"], width // 2)

    lstm = []
    for (w_ih, w_hh, b_ih, b_hh) in params["lstm"]:
        lstm.append((
            jnp.asarray(np.asarray(w_ih, np.float32).T, dtype=jnp.bfloat16),
            jnp.asarray(np.asarray(w_hh, np.float32).T, dtype=jnp.bfloat16),
            jnp.asarray((np.asarray(b_ih, np.float32)
                         + np.asarray(b_hh, np.float32)).reshape(1, -1)),
        ))

    return {
        "band1": c1["band"], "bias1": c1["bias"], "scale1": c1["scale"], "shift1": c1["shift"],
        "band2": c2["band"], "bias2": c2["bias"], "scale2": c2["scale"], "shift2": c2["shift"],
        "lstm": lstm,
        "fc_w": jnp.asarray(np.asarray(params["fc_w"], np.float32).reshape(1, -1)),
        "fc_b": jnp.asarray(np.asarray(params["fc_b"], np.float32).reshape(1, 1)),
    }


# ---------------------------------- Forward ----------------------------------
def cnn_lstm_forward(x, prep):
    B, T, C, F = x.shape
    width = C
    assert width % 4 == 0
    oc1 = prep["band1"].shape[1] // width
    oc2 = prep["band2"].shape[1] // (width // 2)
    w_out = width // 4

    conv_out = _cnn_forward(x.reshape(B * T, C * F).astype(jnp.float32),
                            prep, width, oc1, oc2)                 # (B*T, w_out*oc2)

    # Reproduce PyTorch exactly: flatten(NCHW) -> view(B, T, -1), staged time-major
    # and padded to 8-row time slabs for the LSTM kernel (one fused XLA transpose).
    assert oc2 % T == 0, "relayout assumes channels split evenly across view timesteps"
    cpt = oc2 // T
    feat_dim = cpt * T * w_out
    feats = (conv_out.reshape(B, T, w_out, T, cpt)                 # [b, t_h, w, tv, c_lo]
             .transpose(3, 0, 4, 1, 2)                             # (tv, b, c_lo, t_h, w)
             .reshape(T, B, feat_dim))                             # (T, B, 256) time-major
    bp = ((B + 7) // 8) * 8
    feats_pad = jnp.pad(feats, ((0, 0), (0, bp - B), (0, 0))).reshape(T * bp, feat_dim)

    out = _lstm_fc_forward(feats_pad, prep["lstm"], prep["fc_w"], prep["fc_b"], T, bp)
    return out[:B, :]                                              # (B, T)


# ------------------------------- Param init -----------------------------------
def init_params(key, hidden_dim=32, lstm_layers=2, in_features=3, width=8):
    keys = iter(jax.random.split(key, 32))

    def nrm(shape, scale=0.1):
        return scale * jax.random.normal(next(keys), shape, dtype=jnp.float32)

    def bn_params(c):
        # eval-mode BatchNorm: (gamma, beta, running_mean, running_var)
        return (1.0 + nrm((c,), 0.05), nrm((c,), 0.05),
                nrm((c,), 0.05), 1.0 + jnp.abs(nrm((c,), 0.05)))

    conv1_w, conv1_b = nrm((64, in_features, 1, 3)), nrm((64,))
    conv2_w, conv2_b = nrm((128, 64, 1, 3)), nrm((128,))
    g1, be1, m1, v1 = bn_params(64)
    g2, be2, m2, v2 = bn_params(128)

    lstm = []
    d = 128 * (width // 4)      # flattened_features == 256 when width == 8
    for _ in range(lstm_layers):
        lstm.append((nrm((4 * hidden_dim, d)), nrm((4 * hidden_dim, hidden_dim)),
                     nrm((4 * hidden_dim,)), nrm((4 * hidden_dim,))))
        d = hidden_dim

    return {
        "conv1": (conv1_w, conv1_b, g1, be1, m1, v1),
        "conv2": (conv2_w, conv2_b, g2, be2, m2, v2),
        "lstm": lstm,
        "fc_w": nrm((1, hidden_dim)),
        "fc_b": nrm((1,)),
    }


if __name__ == "__main__":
    key = jax.random.PRNGKey(0)
    pkey, xkey = jax.random.split(key)
    hidden_dim, lstm_layers = 32, 2
    params = init_params(pkey, hidden_dim, lstm_layers)

    # x: (B, T, C, F) with F=3 (Conv2d in_channels) and C=8 so that
    # 128 * (C // 4) == 256 == self.flattened_features.
    x = jax.random.normal(xkey, (2, 8, 8, 3), dtype=jnp.float32)

    prep = prepare_params(params, width=x.shape[2])   # one-time weight prep, outside jit
    fwd = jax.jit(cnn_lstm_forward)
    out = fwd(x, prep)
    jax.block_until_ready(out)
    assert out.shape == (2, 8), out.shape
    assert bool(jnp.all(jnp.isfinite(out)))
    print("KERNEL_OK")
</pallas_src>

<mosaic_0001>
module attributes {stable_mosaic.version = 11 : i64} {
  func.func @kernel(%arg0: memref<16x24xf32, #tpu.memory_space<vmem>>, %arg1: memref<24x512xbf16, #tpu.memory_space<vmem>>, %arg2: memref<1x512xf32, #tpu.memory_space<vmem>>, %arg3: memref<1x512xf32, #tpu.memory_space<vmem>>, %arg4: memref<1x512xf32, #tpu.memory_space<vmem>>, %arg5: memref<256x512xbf16, #tpu.memory_space<vmem>>, %arg6: memref<1x512xf32, #tpu.memory_space<vmem>>, %arg7: memref<1x512xf32, #tpu.memory_space<vmem>>, %arg8: memref<1x512xf32, #tpu.memory_space<vmem>>, %arg9: memref<16x256xf32, #tpu.memory_space<vmem>>) attributes {dimension_semantics = [], scalar_prefetch = 0 : i64, scratch_operands = 0 : i64, tpu.core_type = #tpu.core_type<tc>} {
    %c0 = arith.constant 0 : index
    %c0_0 = arith.constant 0 : index
    %0 = vector.load %arg0[%c0, %c0_0] : memref<16x24xf32, #tpu.memory_space<vmem>>, vector<16x24xf32>
    %1 = arith.truncf %0 : vector<16x24xf32> to vector<16x24xbf16>
    %c0_1 = arith.constant 0 : index
    %c0_2 = arith.constant 0 : index
    %2 = vector.load %arg1[%c0_1, %c0_2] : memref<24x512xbf16, #tpu.memory_space<vmem>>, vector<24x512xbf16>
    %cst = arith.constant dense<0.000000e+00> : vector<16x512xf32>
    %3 = tpu.matmul %1, %2, %cst {dimension_numbers = #tpu.dot_dimension_numbers<[1], [0], [0], [1], [0, 0, 1, 1], [], []>} : vector<16x24xbf16>, vector<24x512xbf16>, vector<16x512xf32> -> vector<16x512xf32>
    %c0_3 = arith.constant 0 : index
    %c0_4 = arith.constant 0 : index
    %4 = vector.load %arg2[%c0_3, %c0_4] : memref<1x512xf32, #tpu.memory_space<vmem>>, vector<1x512xf32>
    %5 = vector.broadcast %4 : vector<1x512xf32> to vector<16x512xf32>
    %6 = arith.addf %3, %5 : vector<16x512xf32>
    %cst_5 = arith.constant 0.000000e+00 : f32
    %7 = vector.broadcast %cst_5 : f32 to vector<16x512xf32>
    %8 = arith.maximumf %6, %7 : vector<16x512xf32>
    %c0_6 = arith.constant 0 : index
    %c0_7 = arith.constant 0 : index
    %9 = vector.load %arg3[%c0_6, %c0_7] : memref<1x512xf32, #tpu.memory_space<vmem>>, vector<1x512xf32>
    %10 = vector.broadcast %9 : vector<1x512xf32> to vector<16x512xf32>
    %11 = arith.mulf %8, %10 : vector<16x512xf32>
    %c0_8 = arith.constant 0 : index
    %c0_9 = arith.constant 0 : index
    %12 = vector.load %arg4[%c0_8, %c0_9] : memref<1x512xf32, #tpu.memory_space<vmem>>, vector<1x512xf32>
    %13 = vector.broadcast %12 : vector<1x512xf32> to vector<16x512xf32>
    %14 = arith.addf %11, %13 : vector<16x512xf32>
    %15 = vector.extract_strided_slice %14 {offsets = [0, 0], sizes = [16, 256], strides = [1, 1]} : vector<16x512xf32> to vector<16x256xf32>
    %16 = vector.extract_strided_slice %14 {offsets = [0, 256], sizes = [16, 256], strides = [1, 1]} : vector<16x512xf32> to vector<16x256xf32>
    %17 = arith.maximumf %15, %16 : vector<16x256xf32>
    %18 = arith.truncf %17 : vector<16x256xf32> to vector<16x256xbf16>
    %c0_10 = arith.constant 0 : index
    %c0_11 = arith.constant 0 : index
    %19 = vector.load %arg5[%c0_10, %c0_11] : memref<256x512xbf16, #tpu.memory_space<vmem>>, vector<256x512xbf16>
    %cst_12 = arith.constant dense<0.000000e+00> : vector<16x512xf32>
    %20 = tpu.matmul %18, %19, %cst_12 {dimension_numbers = #tpu.dot_dimension_numbers<[1], [0], [0], [1], [0, 0, 1, 1], [], []>} : vector<16x256xbf16>, vector<256x512xbf16>, vector<16x512xf32> -> vector<16x512xf32>
    %c0_13 = arith.constant 0 : index
    %c0_14 = arith.constant 0 : index
    %21 = vector.load %arg6[%c0_13, %c0_14] : memref<1x512xf32, #tpu.memory_space<vmem>>, vector<1x512xf32>
    %22 = vector.broadcast %21 : vector<1x512xf32> to vector<16x512xf32>
    %23 = arith.addf %20, %22 : vector<16x512xf32>
    %cst_15 = arith.constant 0.000000e+00 : f32
    %24 = vector.broadcast %cst_15 : f32 to vector<16x512xf32>
    %25 = arith.maximumf %23, %24 : vector<16x512xf32>
    %c0_16 = arith.constant 0 : index
    %c0_17 = arith.constant 0 : index
    %26 = vector.load %arg7[%c0_16, %c0_17] : memref<1x512xf32, #tpu.memory_space<vmem>>, vector<1x512xf32>
    %27 = vector.broadcast %26 : vector<1x512xf32> to vector<16x512xf32>
    %28 = arith.mulf %25, %27 : vector<16x512xf32>
    %c0_18 = arith.constant 0 : index
    %c0_19 = arith.constant 0 : index
    %29 = vector.load %arg8[%c0_18, %c0_19] : memref<1x512xf32, #tpu.memory_space<vmem>>, vector<1x512xf32>
    %30 = vector.broadcast %29 : vector<1x512xf32> to vector<16x512xf32>
    %31 = arith.addf %28, %30 : vector<16x512xf32>
    %32 = vector.extract_strided_slice %31 {offsets = [0, 0], sizes = [16, 256], strides = [1, 1]} : vector<16x512xf32> to vector<16x256xf32>
    %33 = vector.extract_strided_slice %31 {offsets = [0, 256], sizes = [16, 256], strides = [1, 1]} : vector<16x512xf32> to vector<16x256xf32>
    %34 = arith.maximumf %32, %33 : vector<16x256xf32>
    %c0_20 = arith.constant 0 : index
    %c0_21 = arith.constant 0 : index
    %35 = vector.load %arg9[%c0_20, %c0_21] : memref<16x256xf32, #tpu.memory_space<vmem>>, vector<16x256xf32>
    tpu.vector_store %arg9[%c0_20, %c0_21], %34 {strides = array<i32>} : memref<16x256xf32, #tpu.memory_space<vmem>>, vector<16x256xf32>,
    return
  }
}

module attributes {stable_mosaic.version = 11 : i64} {
  func.func @kernel(%arg0: memref<64x256xf32, #tpu.memory_space<vmem>>, %arg1: memref<256x128xbf16, #tpu.memory_space<vmem>>, %arg2: memref<32x128xbf16, #tpu.memory_space<vmem>>, %arg3: memref<1x128xf32, #tpu.memory_space<vmem>>, %arg4: memref<32x128xbf16, #tpu.memory_space<vmem>>, %arg5: memref<32x128xbf16, #tpu.memory_space<vmem>>, %arg6: memref<1x128xf32, #tpu.memory_space<vmem>>, %arg7: memref<1x32xf32, #tpu.memory_space<vmem>>, %arg8: memref<1x1xf32, #tpu.memory_space<vmem>>, %arg9: memref<8x8xf32, #tpu.memory_space<vmem>>, %arg10: memref<64x32xf32, #tpu.memory_space<vmem>>) attributes {dimension_semantics = [], scalar_prefetch = 0 : i64, scratch_operands = 1 : i64, tpu.core_type = #tpu.core_type<tc>} {
    %0 = tpu.iota {dimensions = array<i32: 1>} : vector<8x128xi32>
    %c64_i32 = arith.constant 64 : i32
    %1 = vector.broadcast %c64_i32 : i32 to vector<8x128xi32>
    %2 = arith.cmpi sge, %0, %1 : vector<8x128xi32>
    %c96_i32 = arith.constant 96 : i32
    %3 = vector.broadcast %c96_i32 : i32 to vector<8x128xi32>
    %4 = arith.cmpi slt, %0, %3 : vector<8x128xi32>
    %5 = arith.andi %2, %4 : vector<8x128xi1>
    %c0 = arith.constant 0 : index
    %c0_0 = arith.constant 0 : index
    %6 = vector.load %arg1[%c0, %c0_0] : memref<256x128xbf16, #tpu.memory_space<vmem>>, vector<256x128xbf16>
    %c0_1 = arith.constant 0 : index
    %c0_2 = arith.constant 0 : index
    %7 = vector.load %arg2[%c0_1, %c0_2] : memref<32x128xbf16, #tpu.memory_space<vmem>>, vector<32x128xbf16>
    %c0_3 = arith.constant 0 : index
    %c0_4 = arith.constant 0 : index
    %8 = vector.load %arg3[%c0_3, %c0_4] : memref<1x128xf32, #tpu.memory_space<vmem>>, vector<1x128xf32>
    %c0_5 = arith.constant 0 : index
    %c0_6 = arith.constant 0 : index
    %9 = vector.load %arg0[%c0_5, %c0_6] : memref<64x256xf32, #tpu.memory_space<vmem>>, vector<64x256xf32>
    %10 = arith.truncf %9 : vector<64x256xf32> to vector<64x256xbf16>
    %cst = arith.constant dense<0.000000e+00> : vector<64x128xf32>
    %11 = tpu.matmul %10, %6, %cst {dimension_numbers = #tpu.dot_dimension_numbers<[1], [0], [0], [1], [0, 0, 1, 1], [], []>} : vector<64x256xbf16>, vector<256x128xbf16>, vector<64x128xf32> -> vector<64x128xf32>
    %12 = vector.broadcast %8 : vector<1x128xf32> to vector<64x128xf32>
    %13 = arith.addf %11, %12 : vector<64x128xf32>
    %cst_7 = arith.constant 0.000000e+00 : f32
    %14 = vector.broadcast %cst_7 : f32 to vector<8x32xf32>
    %cst_8 = arith.constant 0.000000e+00 : f32
    %15 = vector.broadcast %cst_8 : f32 to vector<8x32xf32>
    %16 = vector.extract_strided_slice %13 {offsets = [0, 0], sizes = [8, 128], strides = [1, 1]} : vector<64x128xf32> to vector<8x128xf32>
    %17 = arith.truncf %14 : vector<8x32xf32> to vector<8x32xbf16>
    %cst_9 = arith.constant dense<0.000000e+00> : vector<8x128xf32>
    %18 = tpu.matmul %17, %7, %cst_9 {dimension_numbers = #tpu.dot_dimension_numbers<[1], [0], [0], [1], [0, 0, 1, 1], [], []>} : vector<8x32xbf16>, vector<32x128xbf16>, vector<8x128xf32> -> vector<8x128xf32>
    %19 = arith.addf %16, %18 : vector<8x128xf32>
    %cst_10 = arith.constant 5.000000e-01 : f32
    %20 = vector.broadcast %cst_10 : f32 to vector<8x128xf32>
    %21 = arith.mulf %20, %19 : vector<8x128xf32>
    %22 = arith.select %5, %19, %21 : vector<8x128xi1>, vector<8x128xf32>
    %23 = math.tanh %22 : vector<8x128xf32>
    %cst_11 = arith.constant 5.000000e-01 : f32
    %24 = vector.broadcast %cst_11 : f32 to vector<8x128xf32>
    %25 = arith.mulf %24, %23 : vector<8x128xf32>
    %cst_12 = arith.constant 5.000000e-01 : f32
    %26 = vector.broadcast %cst_12 : f32 to vector<8x128xf32>
    %27 = arith.addf %25, %26 : vector<8x128xf32>
    %28 = arith.select %5, %23, %27 : vector<8x128xi1>, vector<8x128xf32>
    %29 = vector.extract_strided_slice %28 {offsets = [0, 0], sizes = [8, 32], strides = [1, 1]} : vector<8x128xf32> to vector<8x32xf32>
    %30 = vector.extract_strided_slice %28 {offsets = [0, 32], sizes = [8, 32], strides = [1, 1]} : vector<8x128xf32> to vector<8x32xf32>
    %31 = vector.extract_strided_slice %28 {offsets = [0, 64], sizes = [8, 32], strides = [1, 1]} : vector<8x128xf32> to vector<8x32xf32>
    %32 = vector.extract_strided_slice %28 {offsets = [0, 96], sizes = [8, 32], strides = [1, 1]} : vector<8x128xf32> to vector<8x32xf32>
    %33 = arith.mulf %30, %15 : vector<8x32xf32>
    %34 = arith.mulf %29, %31 : vector<8x32xf32>
    %35 = arith.addf %33, %34 : vector<8x32xf32>
    %36 = math.tanh %35 : vector<8x32xf32>
    %37 = arith.mulf %32, %36 : vector<8x32xf32>
    %c0_13 = arith.constant 0 : index
    %c0_14 = arith.constant 0 : index
    %38 = vector.load %arg10[%c0_13, %c0_14] : memref<64x32xf32, #tpu.memory_space<vmem>>, vector<8x32xf32>
    tpu.vector_store %arg10[%c0_13, %c0_14], %37 {strides = array<i32>} : memref<64x32xf32, #tpu.memory_space<vmem>>, vector<8x32xf32>,
    %39 = vector.extract_strided_slice %13 {offsets = [8, 0], sizes = [8, 128], strides = [1, 1]} : vector<64x128xf32> to vector<8x128xf32>
    %40 = arith.truncf %37 : vector<8x32xf32> to vector<8x32xbf16>
    %cst_15 = arith.constant dense<0.000000e+00> : vector<8x128xf32>
    %41 = tpu.matmul %40, %7, %cst_15 {dimension_numbers = #tpu.dot_dimension_numbers<[1], [0], [0], [1], [0, 0, 1, 1], [], []>} : vector<8x32xbf16>, vector<32x128xbf16>, vector<8x128xf32> -> vector<8x128xf32>
    %42 = arith.addf %39, %41 : vector<8x128xf32>
    %cst_16 = arith.constant 5.000000e-01 : f32
    %43 = vector.broadcast %cst_16 : f32 to vector<8x128xf32>
    %44 = arith.mulf %43, %42 : vector<8x128xf32>
    %45 = arith.select %5, %42, %44 : vector<8x128xi1>, vector<8x128xf32>
    %46 = math.tanh %45 : vector<8x128xf32>
    %cst_17 = arith.constant 5.000000e-01 : f32
    %47 = vector.broadcast %cst_17 : f32 to vector<8x128xf32>
    %48 = arith.mulf %47, %46 : vector<8x128xf32>
    %cst_18 = arith.constant 5.000000e-01 : f32
    %49 = vector.broadcast %cst_18 : f32 to vector<8x128xf32>
    %50 = arith.addf %48, %49 : vector<8x128xf32>
    %51 = arith.select %5, %46, %50 : vector<8x128xi1>, vector<8x128xf32>
    %52 = vector.extract_strided_slice %51 {offsets = [0, 0], sizes = [8, 32], strides = [1, 1]} : vector<8x128xf32> to vector<8x32xf32>
    %53 = vector.extract_strided_slice %51 {offsets = [0, 32], sizes = [8, 32], strides = [1, 1]} : vector<8x128xf32> to vector<8x32xf32>
    %54 = vector.extract_strided_slice %51 {offsets = [0, 64], sizes = [8, 32], strides = [1, 1]} : vector<8x128xf32> to vector<8x32xf32>
    %55 = vector.extract_strided_slice %51 {offsets = [0, 96], sizes = [8, 32], strides = [1, 1]} : vector<8x128xf32> to vector<8x32xf32>
    %56 = arith.mulf %53, %35 : vector<8x32xf32>
    %57 = arith.mulf %52, %54 : vector<8x32xf32>
    %58 = arith.addf %56, %57 : vector<8x32xf32>
    %59 = math.tanh %58 : vector<8x32xf32>
    %60 = arith.mulf %55, %59 : vector<8x32xf32>
    %c8 = arith.constant 8 : index
    %c0_19 = arith.constant 0 : index
    %61 = vector.load %arg10[%c8, %c0_19] : memref<64x32xf32, #tpu.memory_space<vmem>>, vector<8x32xf32>
    tpu.vector_store %arg10[%c8, %c0_19], %60 {strides = array<i32>} : memref<64x32xf32, #tpu.memory_space<vmem>>, vector<8x32xf32>,
    %62 = vector.extract_strided_slice %13 {offsets = [16, 0], sizes = [8, 128], strides = [1, 1]} : vector<64x128xf32> to vector<8x128xf32>
    %63 = arith.truncf %60 : vector<8x32xf32> to vector<8x32xbf16>
    %cst_20 = arith.constant dense<0.000000e+00> : vector<8x128xf32>
    %64 = tpu.matmul %63, %7, %cst_20 {dimension_numbers = #tpu.dot_dimension_numbers<[1], [0], [0], [1], [0, 0, 1, 1], [], []>} : vector<8x32xbf16>, vector<32x128xbf16>, vector<8x128xf32> -> vector<8x128xf32>
    %65 = arith.addf %62, %64 : vector<8x128xf32>
    %cst_21 = arith.constant 5.000000e-01 : f32
    %66 = vector.broadcast %cst_21 : f32 to vector<8x128xf32>
    %67 = arith.mulf %66, %65 : vector<8x128xf32>
    %68 = arith.select %5, %65, %67 : vector<8x128xi1>, vector<8x128xf32>
    %69 = math.tanh %68 : vector<8x128xf32>
    %cst_22 = arith.constant 5.000000e-01 : f32
    %70 = vector.broadcast %cst_22 : f32 to vector<8x128xf32>
    %71 = arith.mulf %70, %69 : vector<8x128xf32>
    %cst_23 = arith.constant 5.000000e-01 : f32
    %72 = vector.broadcast %cst_23 : f32 to vector<8x128xf32>
    %73 = arith.addf %71, %72 : vector<8x128xf32>
    %74 = arith.select %5, %69, %73 : vector<8x128xi1>, vector<8x128xf32>
    %75 = vector.extract_strided_slice %74 {offsets = [0, 0], sizes = [8, 32], strides = [1, 1]} : vector<8x128xf32> to vector<8x32xf32>
    %76 = vector.extract_strided_slice %74 {offsets = [0, 32], sizes = [8, 32], strides = [1, 1]} : vector<8x128xf32> to vector<8x32xf32>
    %77 = vector.extract_strided_slice %74 {offsets = [0, 64], sizes = [8, 32], strides = [1, 1]} : vector<8x128xf32> to vector<8x32xf32>
    %78 = vector.extract_strided_slice %74 {offsets = [0, 96], sizes = [8, 32], strides = [1, 1]} : vector<8x128xf32> to vector<8x32xf32>
    %79 = arith.mulf %76, %58 : vector<8x32xf32>
    %80 = arith.mulf %75, %77 : vector<8x32xf32>
    %81 = arith.addf %79, %80 : vector<8x32xf32>
    %82 = math.tanh %81 : vector<8x32xf32>
    %83 = arith.mulf %78, %82 : vector<8x32xf32>
    %c16 = arith.constant 16 : index
    %c0_24 = arith.constant 0 : index
    %84 = vector.load %arg10[%c16, %c0_24] : memref<64x32xf32, #tpu.memory_space<vmem>>, vector<8x32xf32>
    tpu.vector_store %arg10[%c16, %c0_24], %83 {strides = array<i32>} : memref<64x32xf32, #tpu.memory_space<vmem>>, vector<8x32xf32>,
    %85 = vector.extract_strided_slice %13 {offsets = [24, 0], sizes = [8, 128], strides = [1, 1]} : vector<64x128xf32> to vector<8x128xf32>
    %86 = arith.truncf %83 : vector<8x32xf32> to vector<8x32xbf16>
    %cst_25 = arith.constant dense<0.000000e+00> : vector<8x128xf32>
    %87 = tpu.matmul %86, %7, %cst_25 {dimension_numbers = #tpu.dot_dimension_numbers<[1], [0], [0], [1], [0, 0, 1, 1], [], []>} : vector<8x32xbf16>, vector<32x128xbf16>, vector<8x128xf32> -> vector<8x128xf32>
    %88 = arith.addf %85, %87 : vector<8x128xf32>
    %cst_26 = arith.constant 5.000000e-01 : f32
    %89 = vector.broadcast %cst_26 : f32 to vector<8x128xf32>
    %90 = arith.mulf %89, %88 : vector<8x128xf32>
    %91 = arith.select %5, %88, %90 : vector<8x128xi1>, vector<8x128xf32>
    %92 = math.tanh %91 : vector<8x128xf32>
    %cst_27 = arith.constant 5.000000e-01 : f32
    %93 = vector.broadcast %cst_27 : f32 to vector<8x128xf32>
    %94 = arith.mulf %93, %92 : vector<8x128xf32>
    %cst_28 = arith.constant 5.000000e-01 : f32
    %95 = vector.broadcast %cst_28 : f32 to vector<8x128xf32>
    %96 = arith.addf %94, %95 : vector<8x128xf32>
    %97 = arith.select %5, %92, %96 : vector<8x128xi1>, vector<8x128xf32>
    %98 = vector.extract_strided_slice %97 {offsets = [0, 0], sizes = [8, 32], strides = [1, 1]} : vector<8x128xf32> to vector<8x32xf32>
    %99 = vector.extract_strided_slice %97 {offsets = [0, 32], sizes = [8, 32], strides = [1, 1]} : vector<8x128xf32> to vector<8x32xf32>
    %100 = vector.extract_strided_slice %97 {offsets = [0, 64], sizes = [8, 32], strides = [1, 1]} : vector<8x128xf32> to vector<8x32xf32>
    %101 = vector.extract_strided_slice %97 {offsets = [0, 96], sizes = [8, 32], strides = [1, 1]} : vector<8x128xf32> to vector<8x32xf32>
    %102 = arith.mulf %99, %81 : vector<8x32xf32>
    %103 = arith.mulf %98, %100 : vector<8x32xf32>
    %104 = arith.addf %102, %103 : vector<8x32xf32>
    %105 = math.tanh %104 : vector<8x32xf32>
    %106 = arith.mulf %101, %105 : vector<8x32xf32>
    %c24 = arith.constant 24 : index
    %c0_29 = arith.constant 0 : index
    %107 = vector.load %arg10[%c24, %c0_29] : memref<64x32xf32, #tpu.memory_space<vmem>>, vector<8x32xf32>
    tpu.vector_store %arg10[%c24, %c0_29], %106 {strides = array<i32>} : memref<64x32xf32, #tpu.memory_space<vmem>>, vector<8x32xf32>,
    %108 = vector.extract_strided_slice %13 {offsets = [32, 0], sizes = [8, 128], strides = [1, 1]} : vector<64x128xf32> to vector<8x128xf32>
    %109 = arith.truncf %106 : vector<8x32xf32> to vector<8x32xbf16>
    %cst_30 = arith.constant dense<0.000000e+00> : vector<8x128xf32>
    %110 = tpu.matmul %109, %7, %cst_30 {dimension_numbers = #tpu.dot_dimension_numbers<[1], [0], [0], [1], [0, 0, 1, 1], [], []>} : vector<8x32xbf16>, vector<32x128xbf16>, vector<8x128xf32> -> vector<8x128xf32>
    %111 = arith.addf %108, %110 : vector<8x128xf32>
    %cst_31 = arith.constant 5.000000e-01 : f32
    %112 = vector.broadcast %cst_31 : f32 to vector<8x128xf32>
    %113 = arith.mulf %112, %111 : vector<8x128xf32>
    %114 = arith.select %5, %111, %113 : vector<8x128xi1>, vector<8x128xf32>
    %115 = math.tanh %114 : vector<8x128xf32>
    %cst_32 = arith.constant 5.000000e-01 : f32
    %116 = vector.broadcast %cst_32 : f32 to vector<8x128xf32>
    %117 = arith.mulf %116, %115 : vector<8x128xf32>
    %cst_33 = arith.constant 5.000000e-01 : f32
    %118 = vector.broadcast %cst_33 : f32 to vector<8x128xf32>
    %119 = arith.addf %117, %118 : vector<8x128xf32>
    %120 = arith.select %5, %115, %119 : vector<8x128xi1>, vector<8x128xf32>
    %121 = vector.extract_strided_slice %120 {offsets = [0, 0], sizes = [8, 32], strides = [1, 1]} : vector<8x128xf32> to vector<8x32xf32>
    %122 = vector.extract_strided_slice %120 {offsets = [0, 32], sizes = [8, 32], strides = [1, 1]} : vector<8x128xf32> to vector<8x32xf32>
    %123 = vector.extract_strided_slice %120 {offsets = [0, 64], sizes = [8, 32], strides = [1, 1]} : vector<8x128xf32> to vector<8x32xf32>
    %124 = vector.extract_strided_slice %120 {offsets = [0, 96], sizes = [8, 32], strides = [1, 1]} : vector<8x128xf32> to vector<8x32xf32>
    %125 = arith.mulf %122, %104 : vector<8x32xf32>
    %126 = arith.mulf %121, %123 : vector<8x32xf32>
    %127 = arith.addf %125, %126 : vector<8x32xf32>
    %128 = math.tanh %127 : vector<8x32xf32>
    %129 = arith.mulf %124, %128 : vector<8x32xf32>
    %c32 = arith.constant 32 : index
    %c0_34 = arith.constant 0 : index
    %130 = vector.load %arg10[%c32, %c0_34] : memref<64x32xf32, #tpu.memory_space<vmem>>, vector<8x32xf32>
    tpu.vector_store %arg10[%c32, %c0_34], %129 {strides = array<i32>} : memref<64x32xf32, #tpu.memory_space<vmem>>, vector<8x32xf32>,
    %131 = vector.extract_strided_slice %13 {offsets = [40, 0], sizes = [8, 128], strides = [1, 1]} : vector<64x128xf32> to vector<8x128xf32>
    %132 = arith.truncf %129 : vector<8x32xf32> to vector<8x32xbf16>
    %cst_35 = arith.constant dense<0.000000e+00> : vector<8x128xf32>
    %133 = tpu.matmul %132, %7, %cst_35 {dimension_numbers = #tpu.dot_dimension_numbers<[1], [0], [0], [1], [0, 0, 1, 1], [], []>} : vector<8x32xbf16>, vector<32x128xbf16>, vector<8x128xf32> -> vector<8x128xf32>
    %134 = arith.addf %131, %133 : vector<8x128xf32>
    %cst_36 = arith.constant 5.000000e-01 : f32
    %135 = vector.broadcast %cst_36 : f32 to vector<8x128xf32>
    %136 = arith.mulf %135, %134 : vector<8x128xf32>
    %137 = arith.select %5, %134, %136 : vector<8x128xi1>, vector<8x128xf32>
    %138 = math.tanh %137 : vector<8x128xf32>
    %cst_37 = arith.constant 5.000000e-01 : f32
    %139 = vector.broadcast %cst_37 : f32 to vector<8x128xf32>
    %140 = arith.mulf %139, %138 : vector<8x128xf32>
    %cst_38 = arith.constant 5.000000e-01 : f32
    %141 = vector.broadcast %cst_38 : f32 to vector<8x128xf32>
    %142 = arith.addf %140, %141 : vector<8x128xf32>
    %143 = arith.select %5, %138, %142 : vector<8x128xi1>, vector<8x128xf32>
    %144 = vector.extract_strided_slice %143 {offsets = [0, 0], sizes = [8, 32], strides = [1, 1]} : vector<8x128xf32> to vector<8x32xf32>
    %145 = vector.extract_strided_slice %143 {offsets = [0, 32], sizes = [8, 32], strides = [1, 1]} : vector<8x128xf32> to vector<8x32xf32>
    %146 = vector.extract_strided_slice %143 {offsets = [0, 64], sizes = [8, 32], strides = [1, 1]} : vector<8x128xf32> to vector<8x32xf32>
    %147 = vector.extract_strided_slice %143 {offsets = [0, 96], sizes = [8, 32], strides = [1, 1]} : vector<8x128xf32> to vector<8x32xf32>
    %148 = arith.mulf %145, %127 : vector<8x32xf32>
    %149 = arith.mulf %144, %146 : vector<8x32xf32>
    %150 = arith.addf %148, %149 : vector<8x32xf32>
    %151 = math.tanh %150 : vector<8x32xf32>
    %152 = arith.mulf %147, %151 : vector<8x32xf32>
    %c40 = arith.constant 40 : index
    %c0_39 = arith.constant 0 : index
    %153 = vector.load %arg10[%c40, %c0_39] : memref<64x32xf32, #tpu.memory_space<vmem>>, vector<8x32xf32>
    tpu.vector_store %arg10[%c40, %c0_39], %152 {strides = array<i32>} : memref<64x32xf32, #tpu.memory_space<vmem>>, vector<8x32xf32>,
    %154 = vector.extract_strided_slice %13 {offsets = [48, 0], sizes = [8, 128], strides = [1, 1]} : vector<64x128xf32> to vector<8x128xf32>
    %155 = arith.truncf %152 : vector<8x32xf32> to vector<8x32xbf16>
    %cst_40 = arith.constant dense<0.000000e+00> : vector<8x128xf32>
    %156 = tpu.matmul %155, %7, %cst_40 {dimension_numbers = #tpu.dot_dimension_numbers<[1], [0], [0], [1], [0, 0, 1, 1], [], []>} : vector<8x32xbf16>, vector<32x128xbf16>, vector<8x128xf32> -> vector<8x128xf32>
    %157 = arith.addf %154, %156 : vector<8x128xf32>
    %cst_41 = arith.constant 5.000000e-01 : f32
    %158 = vector.broadcast %cst_41 : f32 to vector<8x128xf32>
    %159 = arith.mulf %158, %157 : vector<8x128xf32>
    %160 = arith.select %5, %157, %159 : vector<8x128xi1>, vector<8x128xf32>
    %161 = math.tanh %160 : vector<8x128xf32>
    %cst_42 = arith.constant 5.000000e-01 : f32
    %162 = vector.broadcast %cst_42 : f32 to vector<8x128xf32>
    %163 = arith.mulf %162, %161 : vector<8x128xf32>
    %cst_43 = arith.constant 5.000000e-01 : f32
    %164 = vector.broadcast %cst_43 : f32 to vector<8x128xf32>
    %165 = arith.addf %163, %164 : vector<8x128xf32>
    %166 = arith.select %5, %161, %165 : vector<8x128xi1>, vector<8x128xf32>
    %167 = vector.extract_strided_slice %166 {offsets = [0, 0], sizes = [8, 32], strides = [1, 1]} : vector<8x128xf32> to vector<8x32xf32>
    %168 = vector.extract_strided_slice %166 {offsets = [0, 32], sizes = [8, 32], strides = [1, 1]} : vector<8x128xf32> to vector<8x32xf32>
    %169 = vector.extract_strided_slice %166 {offsets = [0, 64], sizes = [8, 32], strides = [1, 1]} : vector<8x128xf32> to vector<8x32xf32>
    %170 = vector.extract_strided_slice %166 {offsets = [0, 96], sizes = [8, 32], strides = [1, 1]} : vector<8x128xf32> to vector<8x32xf32>
    %171 = arith.mulf %168, %150 : vector<8x32xf32>
    %172 = arith.mulf %167, %169 : vector<8x32xf32>
    %173 = arith.addf %171, %172 : vector<8x32xf32>
    %174 = math.tanh %173 : vector<8x32xf32>
    %175 = arith.mulf %170, %174 : vector<8x32xf32>
    %c48 = arith.constant 48 : index
    %c0_44 = arith.constant 0 : index
    %176 = vector.load %arg10[%c48, %c0_44] : memref<64x32xf32, #tpu.memory_space<vmem>>, vector<8x32xf32>
    tpu.vector_store %arg10[%c48, %c0_44], %175 {strides = array<i32>} : memref<64x32xf32, #tpu.memory_space<vmem>>, vector<8x32xf32>,
    %177 = vector.extract_strided_slice %13 {offsets = [56, 0], sizes = [8, 128], strides = [1, 1]} : vector<64x128xf32> to vector<8x128xf32>
    %178 = arith.truncf %175 : vector<8x32xf32> to vector<8x32xbf16>
    %cst_45 = arith.constant dense<0.000000e+00> : vector<8x128xf32>
    %179 = tpu.matmul %178, %7, %cst_45 {dimension_numbers = #tpu.dot_dimension_numbers<[1], [0], [0], [1], [0, 0, 1, 1], [], []>} : vector<8x32xbf16>, vector<32x128xbf16>, vector<8x128xf32> -> vector<8x128xf32>
    %180 = arith.addf %177, %179 : vector<8x128xf32>
    %cst_46 = arith.constant 5.000000e-01 : f32
    %181 = vector.broadcast %cst_46 : f32 to vector<8x128xf32>
    %182 = arith.mulf %181, %180 : vector<8x128xf32>
    %183 = arith.select %5, %180, %182 : vector<8x128xi1>, vector<8x128xf32>
    %184 = math.tanh %183 : vector<8x128xf32>
    %cst_47 = arith.constant 5.000000e-01 : f32
    %185 = vector.broadcast %cst_47 : f32 to vector<8x128xf32>
    %186 = arith.mulf %185, %184 : vector<8x128xf32>
    %cst_48 = arith.constant 5.000000e-01 : f32
    %187 = vector.broadcast %cst_48 : f32 to vector<8x128xf32>
    %188 = arith.addf %186, %187 : vector<8x128xf32>
    %189 = arith.select %5, %184, %188 : vector<8x128xi1>, vector<8x128xf32>
    %190 = vector.extract_strided_slice %189 {offsets = [0, 0], sizes = [8, 32], strides = [1, 1]} : vector<8x128xf32> to vector<8x32xf32>
    %191 = vector.extract_strided_slice %189 {offsets = [0, 32], sizes = [8, 32], strides = [1, 1]} : vector<8x128xf32> to vector<8x32xf32>
    %192 = vector.extract_strided_slice %189 {offsets = [0, 64], sizes = [8, 32], strides = [1, 1]} : vector<8x128xf32> to vector<8x32xf32>
    %193 = vector.extract_strided_slice %189 {offsets = [0, 96], sizes = [8, 32], strides = [1, 1]} : vector<8x128xf32> to vector<8x32xf32>
    %194 = arith.mulf %191, %173 : vector<8x32xf32>
    %195 = arith.mulf %190, %192 : vector<8x32xf32>
    %196 = arith.addf %194, %195 : vector<8x32xf32>
    %197 = math.tanh %196 : vector<8x32xf32>
    %198 = arith.mulf %193, %197 : vector<8x32xf32>
    %c56 = arith.constant 56 : index
    %c0_49 = arith.constant 0 : index
    %199 = vector.load %arg10[%c56, %c0_49] : memref<64x32xf32, #tpu.memory_space<vmem>>, vector<8x32xf32>
    tpu.vector_store %arg10[%c56, %c0_49], %198 {strides = array<i32>} : memref<64x32xf32, #tpu.memory_space<vmem>>, vector<8x32xf32>,
    %c0_50 = arith.constant 0 : index
    %c0_51 = arith.constant 0 : index
    %200 = vector.load %arg4[%c0_50, %c0_51] : memref<32x128xbf16, #tpu.memory_space<vmem>>, vector<32x128xbf16>
    %c0_52 = arith.constant 0 : index
    %c0_53 = arith.constant 0 : index
    %201 = vector.load %arg5[%c0_52, %c0_53] : memref<32x128xbf16, #tpu.memory_space<vmem>>, vector<32x128xbf16>
    %c0_54 = arith.constant 0 : index
    %c0_55 = arith.constant 0 : index
    %202 = vector.load %arg6[%c0_54, %c0_55] : memref<1x128xf32, #tpu.memory_space<vmem>>, vector<1x128xf32>
    %c0_56 = arith.constant 0 : index
    %c0_57 = arith.constant 0 : index
    %203 = vector.load %arg10[%c0_56, %c0_57] : memref<64x32xf32, #tpu.memory_space<vmem>>, vector<64x32xf32>
    %204 = arith.truncf %203 : vector<64x32xf32> to vector<64x32xbf16>
    %cst_58 = arith.constant dense<0.000000e+00> : vector<64x128xf32>
    %205 = tpu.matmul %204, %200, %cst_58 {dimension_numbers = #tpu.dot_dimension_numbers<[1], [0], [0], [1], [0, 0, 1, 1], [], []>} : vector<64x32xbf16>, vector<32x128xbf16>, vector<64x128xf32> -> vector<64x128xf32>
    %206 = vector.broadcast %202 : vector<1x128xf32> to vector<64x128xf32>
    %207 = arith.addf %205, %206 : vector<64x128xf32>
    %cst_59 = arith.constant 0.000000e+00 : f32
    %208 = vector.broadcast %cst_59 : f32 to vector<8x32xf32>
    %cst_60 = arith.constant 0.000000e+00 : f32
    %209 = vector.broadcast %cst_60 : f32 to vector<8x32xf32>
    %210 = vector.extract_strided_slice %207 {offsets = [0, 0], sizes = [8, 128], strides = [1, 1]} : vector<64x128xf32> to vector<8x128xf32>
    %211 = arith.truncf %208 : vector<8x32xf32> to vector<8x32xbf16>
    %cst_61 = arith.constant dense<0.000000e+00> : vector<8x128xf32>
    %212 = tpu.matmul %211, %201, %cst_61 {dimension_numbers = #tpu.dot_dimension_numbers<[1], [0], [0], [1], [0, 0, 1, 1], [], []>} : vector<8x32xbf16>, vector<32x128xbf16>, vector<8x128xf32> -> vector<8x128xf32>
    %213 = arith.addf %210, %212 : vector<8x128xf32>
    %cst_62 = arith.constant 5.000000e-01 : f32
    %214 = vector.broadcast %cst_62 : f32 to vector<8x128xf32>
    %215 = arith.mulf %214, %213 : vector<8x128xf32>
    %216 = arith.select %5, %213, %215 : vector<8x128xi1>, vector<8x128xf32>
    %217 = math.tanh %216 : vector<8x128xf32>
    %cst_63 = arith.constant 5.000000e-01 : f32
    %218 = vector.broadcast %cst_63 : f32 to vector<8x128xf32>
    %219 = arith.mulf %218, %217 : vector<8x128xf32>
    %cst_64 = arith.constant 5.000000e-01 : f32
    %220 = vector.broadcast %cst_64 : f32 to vector<8x128xf32>
    %221 = arith.addf %219, %220 : vector<8x128xf32>
    %222 = arith.select %5, %217, %221 : vector<8x128xi1>, vector<8x128xf32>
    %223 = vector.extract_strided_slice %222 {offsets = [0, 0], sizes = [8, 32], strides = [1, 1]} : vector<8x128xf32> to vector<8x32xf32>
    %224 = vector.extract_strided_slice %222 {offsets = [0, 32], sizes = [8, 32], strides = [1, 1]} : vector<8x128xf32> to vector<8x32xf32>
    %225 = vector.extract_strided_slice %222 {offsets = [0, 64], sizes = [8, 32], strides = [1, 1]} : vector<8x128xf32> to vector<8x32xf32>
    %226 = vector.extract_strided_slice %222 {offsets = [0, 96], sizes = [8, 32], strides = [1, 1]} : vector<8x128xf32> to vector<8x32xf32>
    %227 = arith.mulf %224, %209 : vector<8x32xf32>
    %228 = arith.mulf %223, %225 : vector<8x32xf32>
    %229 = arith.addf %227, %228 : vector<8x32xf32>
    %230 = math.tanh %229 : vector<8x32xf32>
    %231 = arith.mulf %226, %230 : vector<8x32xf32>
    %c0_65 = arith.constant 0 : index
    %c0_66 = arith.constant 0 : index
    %232 = vector.load %arg7[%c0_65, %c0_66] : memref<1x32xf32, #tpu.memory_space<vmem>>, vector<1x32xf32>
    %233 = vector.broadcast %232 : vector<1x32xf32> to vector<8x32xf32>
    %234 = arith.mulf %231, %233 : vector<8x32xf32>
    %cst_67 = arith.constant dense<0.000000e+00> : vector<8xf32>
    %235 = vector.multi_reduction <add>, %234, %cst_67 [1] : vector<8x32xf32> to vector<8xf32>
    %236 = vector.shape_cast %235 : vector<8xf32> to vector<8x1xf32>
    %237 = vector.extract_strided_slice %207 {offsets = [8, 0], sizes = [8, 128], strides = [1, 1]} : vector<64x128xf32> to vector<8x128xf32>
    %238 = arith.truncf %231 : vector<8x32xf32> to vector<8x32xbf16>
    %cst_68 = arith.constant dense<0.000000e+00> : vector<8x128xf32>
    %239 = tpu.matmul %238, %201, %cst_68 {dimension_numbers = #tpu.dot_dimension_numbers<[1], [0], [0], [1], [0, 0, 1, 1], [], []>} : vector<8x32xbf16>, vector<32x128xbf16>, vector<8x128xf32> -> vector<8x128xf32>
    %240 = arith.addf %237, %239 : vector<8x128xf32>
    %cst_69 = arith.constant 5.000000e-01 : f32
    %241 = vector.broadcast %cst_69 : f32 to vector<8x128xf32>
    %242 = arith.mulf %241, %240 : vector<8x128xf32>
    %243 = arith.select %5, %240, %242 : vector<8x128xi1>, vector<8x128xf32>
    %244 = math.tanh %243 : vector<8x128xf32>
    %cst_70 = arith.constant 5.000000e-01 : f32
    %245 = vector.broadcast %cst_70 : f32 to vector<8x128xf32>
    %246 = arith.mulf %245, %244 : vector<8x128xf32>
    %cst_71 = arith.constant 5.000000e-01 : f32
    %247 = vector.broadcast %cst_71 : f32 to vector<8x128xf32>
    %248 = arith.addf %246, %247 : vector<8x128xf32>
    %249 = arith.select %5, %244, %248 : vector<8x128xi1>, vector<8x128xf32>
    %250 = vector.extract_strided_slice %249 {offsets = [0, 0], sizes = [8, 32], strides = [1, 1]} : vector<8x128xf32> to vector<8x32xf32>
    %251 = vector.extract_strided_slice %249 {offsets = [0, 32], sizes = [8, 32], strides = [1, 1]} : vector<8x128xf32> to vector<8x32xf32>
    %252 = vector.extract_strided_slice %249 {offsets = [0, 64], sizes = [8, 32], strides = [1, 1]} : vector<8x128xf32> to vector<8x32xf32>
    %253 = vector.extract_strided_slice %249 {offsets = [0, 96], sizes = [8, 32], strides = [1, 1]} : vector<8x128xf32> to vector<8x32xf32>
    %254 = arith.mulf %251, %229 : vector<8x32xf32>
    %255 = arith.mulf %250, %252 : vector<8x32xf32>
    %256 = arith.addf %254, %255 : vector<8x32xf32>
    %257 = math.tanh %256 : vector<8x32xf32>
    %258 = arith.mulf %253, %257 : vector<8x32xf32>
    %c0_72 = arith.constant 0 : index
    %c0_73 = arith.constant 0 : index
    %259 = vector.load %arg7[%c0_72, %c0_73] : memref<1x32xf32, #tpu.memory_space<vmem>>, vector<1x32xf32>
    %260 = vector.broadcast %259 : vector<1x32xf32> to vector<8x32xf32>
    %261 = arith.mulf %258, %260 : vector<8x32xf32>
    %cst_74 = arith.constant dense<0.000000e+00> : vector<8xf32>
    %262 = vector.multi_reduction <add>, %261, %cst_74 [1] : vector<8x32xf32> to vector<8xf32>
    %263 = vector.shape_cast %262 : vector<8xf32> to vector<8x1xf32>
    %264 = vector.extract_strided_slice %207 {offsets = [16, 0], sizes = [8, 128], strides = [1, 1]} : vector<64x128xf32> to vector<8x128xf32>
    %265 = arith.truncf %258 : vector<8x32xf32> to vector<8x32xbf16>
    %cst_75 = arith.constant dense<0.000000e+00> : vector<8x128xf32>
    %266 = tpu.matmul %265, %201, %cst_75 {dimension_numbers = #tpu.dot_dimension_numbers<[1], [0], [0], [1], [0, 0, 1, 1], [], []>} : vector<8x32xbf16>, vector<32x128xbf16>, vector<8x128xf32> -> vector<8x128xf32>
    %267 = arith.addf %264, %266 : vector<8x128xf32>
    %cst_76 = arith.constant 5.000000e-01 : f32
    %268 = vector.broadcast %cst_76 : f32 to vector<8x128xf32>
    %269 = arith.mulf %268, %267 : vector<8x128xf32>
    %270 = arith.select %5, %267, %269 : vector<8x128xi1>, vector<8x128xf32>
    %271 = math.tanh %270 : vector<8x128xf32>
    %cst_77 = arith.constant 5.000000e-01 : f32
    %272 = vector.broadcast %cst_77 : f32 to vector<8x128xf32>
    %273 = arith.mulf %272, %271 : vector<8x128xf32>
    %cst_78 = arith.constant 5.000000e-01 : f32
    %274 = vector.broadcast %cst_78 : f32 to vector<8x128xf32>
    %275 = arith.addf %273, %274 : vector<8x128xf32>
    %276 = arith.select %5, %271, %275 : vector<8x128xi1>, vector<8x128xf32>
    %277 = vector.extract_strided_slice %276 {offsets = [0, 0], sizes = [8, 32], strides = [1, 1]} : vector<8x128xf32> to vector<8x32xf32>
    %278 = vector.extract_strided_slice %276 {offsets = [0, 32], sizes = [8, 32], strides = [1, 1]} : vector<8x128xf32> to vector<8x32xf32>
    %279 = vector.extract_strided_slice %276 {offsets = [0, 64], sizes = [8, 32], strides = [1, 1]} : vector<8x128xf32> to vector<8x32xf32>
    %280 = vector.extract_strided_slice %276 {offsets = [0, 96], sizes = [8, 32], strides = [1, 1]} : vector<8x128xf32> to vector<8x32xf32>
    %281 = arith.mulf %278, %256 : vector<8x32xf32>
    %282 = arith.mulf %277, %279 : vector<8x32xf32>
    %283 = arith.addf %281, %282 : vector<8x32xf32>
    %284 = math.tanh %283 : vector<8x32xf32>
    %285 = arith.mulf %280, %284 : vector<8x32xf32>
    %c0_79 = arith.constant 0 : index
    %c0_80 = arith.constant 0 : index
    %286 = vector.load %arg7[%c0_79, %c0_80] : memref<1x32xf32, #tpu.memory_space<vmem>>, vector<1x32xf32>
    %287 = vector.broadcast %286 : vector<1x32xf32> to vector<8x32xf32>
    %288 = arith.mulf %285, %287 : vector<8x32xf32>
    %cst_81 = arith.constant dense<0.000000e+00> : vector<8xf32>
    %289 = vector.multi_reduction <add>, %288, %cst_81 [1] : vector<8x32xf32> to vector<8xf32>
    %290 = vector.shape_cast %289 : vector<8xf32> to vector<8x1xf32>
    %291 = vector.extract_strided_slice %207 {offsets = [24, 0], sizes = [8, 128], strides = [1, 1]} : vector<64x128xf32> to vector<8x128xf32>
    %292 = arith.truncf %285 : vector<8x32xf32> to vector<8x32xbf16>
    %cst_82 = arith.constant dense<0.000000e+00> : vector<8x128xf32>
    %293 = tpu.matmul %292, %201, %cst_82 {dimension_numbers = #tpu.dot_dimension_numbers<[1], [0], [0], [1], [0, 0, 1, 1], [], []>} : vector<8x32xbf16>, vector<32x128xbf16>, vector<8x128xf32> -> vector<8x128xf32>
    %294 = arith.addf %291, %293 : vector<8x128xf32>
    %cst_83 = arith.constant 5.000000e-01 : f32
    %295 = vector.broadcast %cst_83 : f32 to vector<8x128xf32>
    %296 = arith.mulf %295, %294 : vector<8x128xf32>
    %297 = arith.select %5, %294, %296 : vector<8x128xi1>, vector<8x128xf32>
    %298 = math.tanh %297 : vector<8x128xf32>
    %cst_84 = arith.constant 5.000000e-01 : f32
    %299 = vector.broadcast %cst_84 : f32 to vector<8x128xf32>
    %300 = arith.mulf %299, %298 : vector<8x128xf32>
    %cst_85 = arith.constant 5.000000e-01 : f32
    %301 = vector.broadcast %cst_85 : f32 to vector<8x128xf32>
    %302 = arith.addf %300, %301 : vector<8x128xf32>
    %303 = arith.select %5, %298, %302 : vector<8x128xi1>, vector<8x128xf32>
    %304 = vector.extract_strided_slice %303 {offsets = [0, 0], sizes = [8, 32], strides = [1, 1]} : vector<8x128xf32> to vector<8x32xf32>
    %305 = vector.extract_strided_slice %303 {offsets = [0, 32], sizes = [8, 32], strides = [1, 1]} : vector<8x128xf32> to vector<8x32xf32>
    %306 = vector.extract_strided_slice %303 {offsets = [0, 64], sizes = [8, 32], strides = [1, 1]} : vector<8x128xf32> to vector<8x32xf32>
    %307 = vector.extract_strided_slice %303 {offsets = [0, 96], sizes = [8, 32], strides = [1, 1]} : vector<8x128xf32> to vector<8x32xf32>
    %308 = arith.mulf %305, %283 : vector<8x32xf32>
    %309 = arith.mulf %304, %306 : vector<8x32xf32>
    %310 = arith.addf %308, %309 : vector<8x32xf32>
    %311 = math.tanh %310 : vector<8x32xf32>
    %312 = arith.mulf %307, %311 : vector<8x32xf32>
    %c0_86 = arith.constant 0 : index
    %c0_87 = arith.constant 0 : index
    %313 = vector.load %arg7[%c0_86, %c0_87] : memref<1x32xf32, #tpu.memory_space<vmem>>, vector<1x32xf32>
    %314 = vector.broadcast %313 : vector<1x32xf32> to vector<8x32xf32>
    %315 = arith.mulf %312, %314 : vector<8x32xf32>
    %cst_88 = arith.constant dense<0.000000e+00> : vector<8xf32>
    %316 = vector.multi_reduction <add>, %315, %cst_88 [1] : vector<8x32xf32> to vector<8xf32>
    %317 = vector.shape_cast %316 : vector<8xf32> to vector<8x1xf32>
    %318 = vector.extract_strided_slice %207 {offsets = [32, 0], sizes = [8, 128], strides = [1, 1]} : vector<64x128xf32> to vector<8x128xf32>
    %319 = arith.truncf %312 : vector<8x32xf32> to vector<8x32xbf16>
    %cst_89 = arith.constant dense<0.000000e+00> : vector<8x128xf32>
    %320 = tpu.matmul %319, %201, %cst_89 {dimension_numbers = #tpu.dot_dimension_numbers<[1], [0], [0], [1], [0, 0, 1, 1], [], []>} : vector<8x32xbf16>, vector<32x128xbf16>, vector<8x128xf32> -> vector<8x128xf32>
    %321 = arith.addf %318, %320 : vector<8x128xf32>
    %cst_90 = arith.constant 5.000000e-01 : f32
    %322 = vector.broadcast %cst_90 : f32 to vector<8x128xf32>
    %323 = arith.mulf %322, %321 : vector<8x128xf32>
    %324 = arith.select %5, %321, %323 : vector<8x128xi1>, vector<8x128xf32>
    %325 = math.tanh %324 : vector<8x128xf32>
    %cst_91 = arith.constant 5.000000e-01 : f32
    %326 = vector.broadcast %cst_91 : f32 to vector<8x128xf32>
    %327 = arith.mulf %326, %325 : vector<8x128xf32>
    %cst_92 = arith.constant 5.000000e-01 : f32
    %328 = vector.broadcast %cst_92 : f32 to vector<8x128xf32>
    %329 = arith.addf %327, %328 : vector<8x128xf32>
    %330 = arith.select %5, %325, %329 : vector<8x128xi1>, vector<8x128xf32>
    %331 = vector.extract_strided_slice %330 {offsets = [0, 0], sizes = [8, 32], strides = [1, 1]} : vector<8x128xf32> to vector<8x32xf32>
    %332 = vector.extract_strided_slice %330 {offsets = [0, 32], sizes = [8, 32], strides = [1, 1]} : vector<8x128xf32> to vector<8x32xf32>
    %333 = vector.extract_strided_slice %330 {offsets = [0, 64], sizes = [8, 32], strides = [1, 1]} : vector<8x128xf32> to vector<8x32xf32>
    %334 = vector.extract_strided_slice %330 {offsets = [0, 96], sizes = [8, 32], strides = [1, 1]} : vector<8x128xf32> to vector<8x32xf32>
    %335 = arith.mulf %332, %310 : vector<8x32xf32>
    %336 = arith.mulf %331, %333 : vector<8x32xf32>
    %337 = arith.addf %335, %336 : vector<8x32xf32>
    %338 = math.tanh %337 : vector<8x32xf32>
    %339 = arith.mulf %334, %338 : vector<8x32xf32>
    %c0_93 = arith.constant 0 : index
    %c0_94 = arith.constant 0 : index
    %340 = vector.load %arg7[%c0_93, %c0_94] : memref<1x32xf32, #tpu.memory_space<vmem>>, vector<1x32xf32>
    %341 = vector.broadcast %340 : vector<1x32xf32> to vector<8x32xf32>
    %342 = arith.mulf %339, %341 : vector<8x32xf32>
    %cst_95 = arith.constant dense<0.000000e+00> : vector<8xf32>
    %343 = vector.multi_reduction <add>, %342, %cst_95 [1] : vector<8x32xf32> to vector<8xf32>
    %344 = vector.shape_cast %343 : vector<8xf32> to vector<8x1xf32>
    %345 = vector.extract_strided_slice %207 {offsets = [40, 0], sizes = [8, 128], strides = [1, 1]} : vector<64x128xf32> to vector<8x128xf32>
    %346 = arith.truncf %339 : vector<8x32xf32> to vector<8x32xbf16>
    %cst_96 = arith.constant dense<0.000000e+00> : vector<8x128xf32>
    %347 = tpu.matmul %346, %201, %cst_96 {dimension_numbers = #tpu.dot_dimension_numbers<[1], [0], [0], [1], [0, 0, 1, 1], [], []>} : vector<8x32xbf16>, vector<32x128xbf16>, vector<8x128xf32> -> vector<8x128xf32>
    %348 = arith.addf %345, %347 : vector<8x128xf32>
    %cst_97 = arith.constant 5.000000e-01 : f32
    %349 = vector.broadcast %cst_97 : f32 to vector<8x128xf32>
    %350 = arith.mulf %349, %348 : vector<8x128xf32>
    %351 = arith.select %5, %348, %350 : vector<8x128xi1>, vector<8x128xf32>
    %352 = math.tanh %351 : vector<8x128xf32>
    %cst_98 = arith.constant 5.000000e-01 : f32
    %353 = vector.broadcast %cst_98 : f32 to vector<8x128xf32>
    %354 = arith.mulf %353, %352 : vector<8x128xf32>
    %cst_99 = arith.constant 5.000000e-01 : f32
    %355 = vector.broadcast %cst_99 : f32 to vector<8x128xf32>
    %356 = arith.addf %354, %355 : vector<8x128xf32>
    %357 = arith.select %5, %352, %356 : vector<8x128xi1>, vector<8x128xf32>
    %358 = vector.extract_strided_slice %357 {offsets = [0, 0], sizes = [8, 32], strides = [1, 1]} : vector<8x128xf32> to vector<8x32xf32>
    %359 = vector.extract_strided_slice %357 {offsets = [0, 32], sizes = [8, 32], strides = [1, 1]} : vector<8x128xf32> to vector<8x32xf32>
    %360 = vector.extract_strided_slice %357 {offsets = [0, 64], sizes = [8, 32], strides = [1, 1]} : vector<8x128xf32> to vector<8x32xf32>
    %361 = vector.extract_strided_slice %357 {offsets = [0, 96], sizes = [8, 32], strides = [1, 1]} : vector<8x128xf32> to vector<8x32xf32>
    %362 = arith.mulf %359, %337 : vector<8x32xf32>
    %363 = arith.mulf %358, %360 : vector<8x32xf32>
    %364 = arith.addf %362, %363 : vector<8x32xf32>
    %365 = math.tanh %364 : vector<8x32xf32>
    %366 = arith.mulf %361, %365 : vector<8x32xf32>
    %c0_100 = arith.constant 0 : index
    %c0_101 = arith.constant 0 : index
    %367 = vector.load %arg7[%c0_100, %c0_101] : memref<1x32xf32, #tpu.memory_space<vmem>>, vector<1x32xf32>
    %368 = vector.broadcast %367 : vector<1x32xf32> to vector<8x32xf32>
    %369 = arith.mulf %366, %368 : vector<8x32xf32>
    %cst_102 = arith.constant dense<0.000000e+00> : vector<8xf32>
    %370 = vector.multi_reduction <add>, %369, %cst_102 [1] : vector<8x32xf32> to vector<8xf32>
    %371 = vector.shape_cast %370 : vector<8xf32> to vector<8x1xf32>
    %372 = vector.extract_strided_slice %207 {offsets = [48, 0], sizes = [8, 128], strides = [1, 1]} : vector<64x128xf32> to vector<8x128xf32>
    %373 = arith.truncf %366 : vector<8x32xf32> to vector<8x32xbf16>
    %cst_103 = arith.constant dense<0.000000e+00> : vector<8x128xf32>
    %374 = tpu.matmul %373, %201, %cst_103 {dimension_numbers = #tpu.dot_dimension_numbers<[1], [0], [0], [1], [0, 0, 1, 1], [], []>} : vector<8x32xbf16>, vector<32x128xbf16>, vector<8x128xf32> -> vector<8x128xf32>
    %375 = arith.addf %372, %374 : vector<8x128xf32>
    %cst_104 = arith.constant 5.000000e-01 : f32
    %376 = vector.broadcast %cst_104 : f32 to vector<8x128xf32>
    %377 = arith.mulf %376, %375 : vector<8x128xf32>
    %378 = arith.select %5, %375, %377 : vector<8x128xi1>, vector<8x128xf32>
    %379 = math.tanh %378 : vector<8x128xf32>
    %cst_105 = arith.constant 5.000000e-01 : f32
    %380 = vector.broadcast %cst_105 : f32 to vector<8x128xf32>
    %381 = arith.mulf %380, %379 : vector<8x128xf32>
    %cst_106 = arith.constant 5.000000e-01 : f32
    %382 = vector.broadcast %cst_106 : f32 to vector<8x128xf32>
    %383 = arith.addf %381, %382 : vector<8x128xf32>
    %384 = arith.select %5, %379, %383 : vector<8x128xi1>, vector<8x128xf32>
    %385 = vector.extract_strided_slice %384 {offsets = [0, 0], sizes = [8, 32], strides = [1, 1]} : vector<8x128xf32> to vector<8x32xf32>
    %386 = vector.extract_strided_slice %384 {offsets = [0, 32], sizes = [8, 32], strides = [1, 1]} : vector<8x128xf32> to vector<8x32xf32>
    %387 = vector.extract_strided_slice %384 {offsets = [0, 64], sizes = [8, 32], strides = [1, 1]} : vector<8x128xf32> to vector<8x32xf32>
    %388 = vector.extract_strided_slice %384 {offsets = [0, 96], sizes = [8, 32], strides = [1, 1]} : vector<8x128xf32> to vector<8x32xf32>
    %389 = arith.mulf %386, %364 : vector<8x32xf32>
    %390 = arith.mulf %385, %387 : vector<8x32xf32>
    %391 = arith.addf %389, %390 : vector<8x32xf32>
    %392 = math.tanh %391 : vector<8x32xf32>
    %393 = arith.mulf %388, %392 : vector<8x32xf32>
    %c0_107 = arith.constant 0 : index
    %c0_108 = arith.constant 0 : index
    %394 = vector.load %arg7[%c0_107, %c0_108] : memref<1x32xf32, #tpu.memory_space<vmem>>, vector<1x32xf32>
    %395 = vector.broadcast %394 : vector<1x32xf32> to vector<8x32xf32>
    %396 = arith.mulf %393, %395 : vector<8x32xf32>
    %cst_109 = arith.constant dense<0.000000e+00> : vector<8xf32>
    %397 = vector.multi_reduction <add>, %396, %cst_109 [1] : vector<8x32xf32> to vector<8xf32>
    %398 = vector.shape_cast %397 : vector<8xf32> to vector<8x1xf32>
    %399 = vector.extract_strided_slice %207 {offsets = [56, 0], sizes = [8, 128], strides = [1, 1]} : vector<64x128xf32> to vector<8x128xf32>
    %400 = arith.truncf %393 : vector<8x32xf32> to vector<8x32xbf16>
    %cst_110 = arith.constant dense<0.000000e+00> : vector<8x128xf32>
    %401 = tpu.matmul %400, %201, %cst_110 {dimension_numbers = #tpu.dot_dimension_numbers<[1], [0], [0], [1], [0, 0, 1, 1], [], []>} : vector<8x32xbf16>, vector<32x128xbf16>, vector<8x128xf32> -> vector<8x128xf32>
    %402 = arith.addf %399, %401 : vector<8x128xf32>
    %cst_111 = arith.constant 5.000000e-01 : f32
    %403 = vector.broadcast %cst_111 : f32 to vector<8x128xf32>
    %404 = arith.mulf %403, %402 : vector<8x128xf32>
    %405 = arith.select %5, %402, %404 : vector<8x128xi1>, vector<8x128xf32>
    %406 = math.tanh %405 : vector<8x128xf32>
    %cst_112 = arith.constant 5.000000e-01 : f32
    %407 = vector.broadcast %cst_112 : f32 to vector<8x128xf32>
    %408 = arith.mulf %407, %406 : vector<8x128xf32>
    %cst_113 = arith.constant 5.000000e-01 : f32
    %409 = vector.broadcast %cst_113 : f32 to vector<8x128xf32>
    %410 = arith.addf %408, %409 : vector<8x128xf32>
    %411 = arith.select %5, %406, %410 : vector<8x128xi1>, vector<8x128xf32>
    %412 = vector.extract_strided_slice %411 {offsets = [0, 0], sizes = [8, 32], strides = [1, 1]} : vector<8x128xf32> to vector<8x32xf32>
    %413 = vector.extract_strided_slice %411 {offsets = [0, 32], sizes = [8, 32], strides = [1, 1]} : vector<8x128xf32> to vector<8x32xf32>
    %414 = vector.extract_strided_slice %411 {offsets = [0, 64], sizes = [8, 32], strides = [1, 1]} : vector<8x128xf32> to vector<8x32xf32>
    %415 = vector.extract_strided_slice %411 {offsets = [0, 96], sizes = [8, 32], strides = [1, 1]} : vector<8x128xf32> to vector<8x32xf32>
    %416 = arith.mulf %413, %391 : vector<8x32xf32>
    %417 = arith.mulf %412, %414 : vector<8x32xf32>
    %418 = arith.addf %416, %417 : vector<8x32xf32>
    %419 = math.tanh %418 : vector<8x32xf32>
    %420 = arith.mulf %415, %419 : vector<8x32xf32>
    %c0_114 = arith.constant 0 : index
    %c0_115 = arith.constant 0 : index
    %421 = vector.load %arg7[%c0_114, %c0_115] : memref<1x32xf32, #tpu.memory_space<vmem>>, vector<1x32xf32>
    %422 = vector.broadcast %421 : vector<1x32xf32> to vector<8x32xf32>
    %423 = arith.mulf %420, %422 : vector<8x32xf32>
    %cst_116 = arith.constant dense<0.000000e+00> : vector<8xf32>
    %424 = vector.multi_reduction <add>, %423, %cst_116 [1] : vector<8x32xf32> to vector<8xf32>
    %425 = vector.shape_cast %424 : vector<8xf32> to vector<8x1xf32>
    %426 = tpu.concatenate %236, %263, %290, %317, %344, %371, %398, %425 in 1 : vector<8x1xf32>, vector<8x1xf32>, vector<8x1xf32>, vector<8x1xf32>, vector<8x1xf32>, vector<8x1xf32>, vector<8x1xf32>, vector<8x1xf32> -> vector<8x8xf32>
    %c0_117 = arith.constant 0 : index
    %c0_118 = arith.constant 0 : index
    %427 = vector.load %arg8[%c0_117, %c0_118] : memref<1x1xf32, #tpu.memory_space<vmem>>, vector<1x1xf32>
    %428 = vector.broadcast %427 : vector<1x1xf32> to vector<8x8xf32>
    %429 = arith.addf %426, %428 : vector<8x8xf32>
    %c0_119 = arith.constant 0 : index
    %c0_120 = arith.constant 0 : index
    %430 = vector.load %arg9[%c0_119, %c0_120] : memref<8x8xf32, #tpu.memory_space<vmem>>, vector<8x8xf32>
    tpu.vector_store %arg9[%c0_119, %c0_120], %429 {strides = array<i32>} : memref<8x8xf32, #tpu.memory_space<vmem>>, vector<8x8xf32>,
    return
  }
}

</mosaic_0001>

<llo_original>
// kernel: cnn_lstm_forward.2
$region0: #{cnn_lstm_forward.2}
  #allocation0 [shape = 'u32[]', space=smem, size = 0x4, offset = 0x4, fixed_abs, tag = 'smem constant byte address 0x4 - core index']
  #allocation1 [shape = 'u32[72,128]{1,0:T(1,128)}', space=vmem, size = 0x9000, scoped, tag = 'internal scratch']
  %s0 = inlined_call_operand.vmem [shape: f32[16,24], index: 0, kind: input, shape index: {}]
  %s1 = inlined_call_operand.vmem [shape: bf16[24,512], index: 1, kind: input, shape index: {}]
  %s2 = inlined_call_operand.vmem [shape: f32[1,512], index: 2, kind: input, shape index: {}]
  %s3 = inlined_call_operand.vmem [shape: f32[1,512], index: 3, kind: input, shape index: {}]
  %s4 = inlined_call_operand.vmem [shape: f32[1,512], index: 4, kind: input, shape index: {}]
  %s5 = inlined_call_operand.hbm [shape: bf16[256,512], index: 5, kind: input, shape index: {}]
  %s6 = inlined_call_operand.vmem [shape: f32[1,512], index: 6, kind: input, shape index: {}]
  %s7 = inlined_call_operand.vmem [shape: f32[1,512], index: 7, kind: input, shape index: {}]
  %s8 = inlined_call_operand.vmem [shape: f32[1,512], index: 8, kind: input, shape index: {}]
  %s9 = inlined_call_operand.vmem [shape: f32[16,256], index: 9, kind: output, shape index: {}]
  %s10 = sld [smem:[#allocation0]]
  $region50: #{cnn_lstm_forward.2} parent=0
    _
  %s12 = ssub.s32 1, %s10
  %s13 = scalar_select 0, %s12, %s10
  $region1: #{cnn_lstm_forward.2} parent=0
    #allocation2 [shape = 'u8[262144]{0}', space=vmem, size = 0x40000, scoped, tag = 'input window, operand 5, single buffered']
    #allocation3 [shape = 's32[1]{0}', space=sflag, size = 0x4, scoped, tag = 'scoped memory for cnn_lstm_forward.2']
    %14 = vsyncpa [#allocation3], 0
    // Predicated region
    $region2: #{cnn_lstm_forward.2} parent=1 // pred_check
      _
    $region3: #{cnn_lstm_forward.2} parent=1 // pred_check_branch
      %16 = sbr.rel (0) target = $region5
    $region4: #{cnn_lstm_forward.2} parent=1 // pred_region
      _
    $region5: #{cnn_lstm_forward.2} parent=1 // pred_fallthru
      _
    // Predicated region
    $region6: #{cnn_lstm_forward.2} parent=1 // pred_check
      _
    $region7: #{cnn_lstm_forward.2} parent=1 // pred_check_branch
      %18 = sbr.rel (0) target = $region9
    $region8: #{cnn_lstm_forward.2} parent=1 // pred_region
      _
    $region9: #{cnn_lstm_forward.2} parent=1 // pred_fallthru
      _
    // Predicated region
    $region10: #{cnn_lstm_forward.2} parent=1 // pred_check
      _
    $region11: #{cnn_lstm_forward.2} parent=1 // pred_check_branch
      %20 = sbr.rel (0) target = $region13
    $region12: #{cnn_lstm_forward.2} parent=1 // pred_region
      _
    $region13: #{cnn_lstm_forward.2} parent=1 // pred_fallthru
      _
    // Predicated region
    $region14: #{cnn_lstm_forward.2} parent=1 // pred_check
      _
    $region15: #{cnn_lstm_forward.2} parent=1 // pred_check_branch
      %22 = sbr.rel (0) target = $region17
    $region16: #{cnn_lstm_forward.2} parent=1 // pred_region
      _
    $region17: #{cnn_lstm_forward.2} parent=1 // pred_fallthru
      _
    // Predicated region
    $region18: #{cnn_lstm_forward.2} parent=1 // pred_check
      _
    $region19: #{cnn_lstm_forward.2} parent=1 // pred_check_branch
      %24 = sbr.rel (0) target = $region21
    $region20: #{cnn_lstm_forward.2} parent=1 // pred_region
      _
    $region21: #{cnn_lstm_forward.2} parent=1 // pred_fallthru
      _
    // Predicated region
    $region22: #{cnn_lstm_forward.2} parent=1 // pred_check
      _
    $region23: #{cnn_lstm_forward.2} parent=1 // pred_check_branch
      %26 = sbr.rel (0) target = $region25
    $region24: #{cnn_lstm_forward.2} parent=1 // pred_region
      %28 = vsyncadd [#allocation3], 0
      %s29 = sshll.u32 %s5, 4
      %s30 = int_to_ptr.hbm [resolvable:$true] %s29
      %s31 = sshll.u32 [#allocation2], 4
      %s32 = int_to_ptr.vmem [resolvable:$true] %s31
      %37 = dma.hbm_to_vmem [thread:$0]  %s30, 8192, %s32, [#allocation3], 256, 256, 16
    $region25: #{cnn_lstm_forward.2} parent=1 // pred_fallthru
      _
    // Predicated region
    $region26: #{cnn_lstm_forward.2} parent=1 // pred_check
      _
    $region27: #{cnn_lstm_forward.2} parent=1 // pred_check_branch
      %39 = sbr.rel (0) target = $region29
    $region28: #{cnn_lstm_forward.2} parent=1 // pred_region
      _
    $region29: #{cnn_lstm_forward.2} parent=1 // pred_fallthru
      _
    // Predicated region
    $region30: #{cnn_lstm_forward.2} parent=1 // pred_check
      _
    $region31: #{cnn_lstm_forward.2} parent=1 // pred_check_branch
      %41 = sbr.rel (0) target = $region33
    $region32: #{cnn_lstm_forward.2} parent=1 // pred_region
      _
    $region33: #{cnn_lstm_forward.2} parent=1 // pred_fallthru
      _
    // Predicated region
    $region34: #{cnn_lstm_forward.2} parent=1 // pred_check
      _
    $region35: #{cnn_lstm_forward.2} parent=1 // pred_check_branch
      %43 = sbr.rel (0) target = $region37
    $region36: #{cnn_lstm_forward.2} parent=1 // pred_region
      _
    $region37: #{cnn_lstm_forward.2} parent=1 // pred_fallthru
      _
    // Predicated region
    $region38: #{cnn_lstm_forward.2} parent=1 // pred_check
      _
    $region39: #{cnn_lstm_forward.2} parent=1 // pred_check_branch
      %45 = sbr.rel (0) target = $region41
    $region40: #{cnn_lstm_forward.2} parent=1 // pred_region
      %47 = dma.done [#allocation3], 8192
    $region41: #{cnn_lstm_forward.2} parent=1 // pred_fallthru
      _
    %v49 = vld [vmem:[%s0] sm:$0xff]
    %v50 = vld [vmem:[%s0 + $0x8] sm:$0xff]
    %v51 = vpack.c.bf16 %v50, %v49
    %v52 = vld [vmem:[%s1] sm:$0xff]
    %v53 = vld [vmem:[%s1 + $0x8] sm:$0xff]
    %v54 = vld [vmem:[%s1 + $0x10] sm:$0xff]
    %v55 = vld [vmem:[%s1 + $0x18] sm:$0xff]
    %v56 = vld [vmem:[%s1 + $0x20] sm:$0xff]
    %v57 = vld [vmem:[%s1 + $0x28] sm:$0xff]
    %v58 = vld [vmem:[%s2] sm:$0xf]
    %v60 = vperm.slane %v58, 0
    %v61 = vperm.slane %v58, 1
    %v62 = vperm.slane %v58, 2
    %v63 = vperm.slane %v58, 3
    %v74 = vunpack.c.l.b16 %v52
    %v75 = vunpack.c.h.b16 %v52
    %v76 = vunpack.c.l.b16 %v53
    %v77 = vunpack.c.h.b16 %v53
    %v78 = vunpack.c.l.b16 %v54
    %v79 = vunpack.c.h.b16 %v54
    %v80 = vunpack.c.l.b16 %v55
    %v81 = vunpack.c.h.b16 %v55
    %v82 = vunpack.c.l.b16 %v56
    %v83 = vunpack.c.h.b16 %v56
    %v84 = vunpack.c.l.b16 %v57
    %v85 = vunpack.c.h.b16 %v57
    %v86 = vpack.c.b16 %v78, %v74
    %v87 = vpack.c.b16 %v79, %v75
    %v88 = vpack.c.b16 %v80, %v76
    %v89 = vpack.c.b16 %v81, %v77
    %v90 = vpack.c.b16 %v82, %v82
    %v91 = vpack.c.b16 %v83, %v83
    %v92 = vpack.c.b16 %v84, %v84
    %v93 = vpack.c.b16 %v85, %v85
    %vm98 = vcmask 195584
    %v100 = vsel %vm98, %v51, 0
    %vm102 = vcmask 1043456
    %v104 = vsel %vm102, %v90, 0
    %v107 = vsel %vm102, %v91, 0
    %v110 = vsel %vm102, %v92, 0
    %v113 = vsel %vm102, %v93, 0
    %115 = vmatpush.bf16.msra.mxu0 0
    %116 = vmatpush.bf16.msra.mxu0 0
    %117 = vmatpush.bf16.msra.mxu0 0
    %118 = vmatpush.bf16.msra.mxu0 0
    %119 = vmatpush.bf16.msra.mxu0 0
    %120 = vmatpush.bf16.msra.mxu0 0
    %121 = vmatpush.bf16.msra.mxu0 %v104
    %122 = vmatpush.bf16.msra.mxu0 %v86
    %123 = vmatmul.bf16.gmra.mxu0 %v100
    %v124 = vpop.f32.mrf.mxu0
    %v125 = vadd.f32 %v60, %v124
    %v126 = vpop.f32.mrf.mxu0
    %v127 = vadd.f32 %v60, %v126
    %128 = vdwg.mxu0
    %129 = vmatpush.bf16.msra.mxu0 0
    %130 = vmatpush.bf16.msra.mxu0 0
    %131 = vmatpush.bf16.msra.mxu0 0
    %132 = vmatpush.bf16.msra.mxu0 0
    %133 = vmatpush.bf16.msra.mxu0 0
    %134 = vmatpush.bf16.msra.mxu0 0
    %135 = vmatpush.bf16.msra.mxu0 %v107
    %136 = vmatpush.bf16.msra.mxu0 %v87
    %137 = vmatmul.bf16.gmra.mxu0 %v100
    %v138 = vpop.f32.mrf.mxu0
    %v139 = vadd.f32 %v61, %v138
    %v140 = vpop.f32.mrf.mxu0
    %v141 = vadd.f32 %v61, %v140
    %142 = vdwg.mxu0
    %143 = vmatpush.bf16.msra.mxu0 0
    %144 = vmatpush.bf16.msra.mxu0 0
    %145 = vmatpush.bf16.msra.mxu0 0
    %146 = vmatpush.bf16.msra.mxu0 0
    %147 = vmatpush.bf16.msra.mxu0 0
    %148 = vmatpush.bf16.msra.mxu0 0
    %149 = vmatpush.bf16.msra.mxu0 %v110
    %150 = vmatpush.bf16.msra.mxu0 %v88
    %151 = vmatmul.bf16.gmra.mxu0 %v100
    %v152 = vpop.f32.mrf.mxu0
    %v153 = vadd.f32 %v62, %v152
    %v154 = vpop.f32.mrf.mxu0
    %v155 = vadd.f32 %v62, %v154
    %156 = vdwg.mxu0
    %157 = vmatpush.bf16.msra.mxu0 0
    %158 = vmatpush.bf16.msra.mxu0 0
    %159 = vmatpush.bf16.msra.mxu0 0
    %160 = vmatpush.bf16.msra.mxu0 0
    %161 = vmatpush.bf16.msra.mxu0 0
    %162 = vmatpush.bf16.msra.mxu0 0
    %163 = vmatpush.bf16.msra.mxu0 %v113
    %164 = vmatpush.bf16.msra.mxu0 %v89
    %165 = vmatmul.bf16.gmra.mxu0 %v100
    %v166 = vpop.f32.mrf.mxu0
    %v167 = vadd.f32 %v63, %v166
    %v168 = vpop.f32.mrf.mxu0
    %v169 = vadd.f32 %v63, %v168
    %170 = vdwg.mxu0
    %v171 = vmax.f32 %v125, 0.0
    %v172 = vmax.f32 %v139, 0.0
    %v173 = vmax.f32 %v153, 0.0
    %v174 = vmax.f32 %v167, 0.0
    %v175 = vmax.f32 %v127, 0.0
    %v176 = vmax.f32 %v141, 0.0
    %v177 = vmax.f32 %v155, 0.0
    %v178 = vmax.f32 %v169, 0.0
    %v179 = vld [vmem:[%s3] sm:$0xf]
    %v181 = vperm.slane %v179, 0
    %v182 = vperm.slane %v179, 1
    %v183 = vperm.slane %v179, 2
    %v184 = vperm.slane %v179, 3
    %v189 = vmul.f32 %v171, %v181
    %v190 = vmul.f32 %v172, %v182
    %v191 = vmul.f32 %v173, %v183
    %v192 = vmul.f32 %v174, %v184
    %v193 = vmul.f32 %v175, %v181
    %v194 = vmul.f32 %v176, %v182
    %v195 = vmul.f32 %v177, %v183
    %v196 = vmul.f32 %v178, %v184
    %v197 = vld [vmem:[%s4] sm:$0xf]
    %v199 = vperm.slane %v197, 0
    %v200 = vperm.slane %v197, 1
    %v201 = vperm.slane %v197, 2
    %v202 = vperm.slane %v197, 3
    %v207 = vadd.f32 %v189, %v199
    %v208 = vadd.f32 %v190, %v200
    %v209 = vadd.f32 %v191, %v201
    %v210 = vadd.f32 %v192, %v202
    %v211 = vadd.f32 %v193, %v199
    %v212 = vadd.f32 %v194, %v200
    %v213 = vadd.f32 %v195, %v201
    %v214 = vadd.f32 %v196, %v202
    %v215 = vmax.f32 %v207, %v209
    %v216 = vmax.f32 %v208, %v210
    %v217 = vmax.f32 %v211, %v213
    %v218 = vmax.f32 %v212, %v214
    %v219 = vpack.c.bf16 %v217, %v215
    %v220 = vpack.c.bf16 %v218, %v216
    %v221 = vld [vmem:[#allocation2] sm:$0xff]
    %v222 = vld [vmem:[#allocation2 + $0x8] sm:$0xff]
    %v223 = vld [vmem:[#allocation2 + $0x10] sm:$0xff]
    %v224 = vld [vmem:[#allocation2 + $0x18] sm:$0xff]
    %v225 = vld [vmem:[#allocation2 + $0x20] sm:$0xff]
    %v226 = vld [vmem:[#allocation2 + $0x28] sm:$0xff]
    %v227 = vld [vmem:[#allocation2 + $0x30] sm:$0xff]
    %v228 = vld [vmem:[#allocation2 + $0x38] sm:$0xff]
    %v229 = vld [vmem:[#allocation2 + $0x40] sm:$0xff]
    %v230 = vld [vmem:[#allocation2 + $0x48] sm:$0xff]
    %v231 = vld [vmem:[#allocation2 + $0x50] sm:$0xff]
    %v232 = vld [vmem:[#allocation2 + $0x58] sm:$0xff]
    %v233 = vld [vmem:[#allocation2 + $0x60] sm:$0xff]
    %v234 = vld [vmem:[#allocation2 + $0x68] sm:$0xff]
    %v235 = vld [vmem:[#allocation2 + $0x70] sm:$0xff]
    %v236 = vld [vmem:[#allocation2 + $0x78] sm:$0xff]
    %v237 = vld [vmem:[#allocation2 + $0x80] sm:$0xff]
    %v238 = vld [vmem:[#allocation2 + $0x88] sm:$0xff]
    %v239 = vld [vmem:[#allocation2 + $0x90] sm:$0xff]
    %v240 = vld [vmem:[#allocation2 + $0x98] sm:$0xff]
    %v241 = vld [vmem:[#allocation2 + $0xa0] sm:$0xff]
    %v242 = vld [vmem:[#allocation2 + $0xa8] sm:$0xff]
    %v243 = vld [vmem:[#allocation2 + $0xb0] sm:$0xff]
    %v244 = vld [vmem:[#allocation2 + $0xb8] sm:$0xff]
    %v245 = vld [vmem:[#allocation2 + $0xc0] sm:$0xff]
    %v246 = vld [vmem:[#allocation2 + $0xc8] sm:$0xff]
    %v247 = vld [vmem:[#allocation2 + $0xd0] sm:$0xff]
    %v248 = vld [vmem:[#allocation2 + $0xd8] sm:$0xff]
    %v249 = vld [vmem:[#allocation2 + $0xe0] sm:$0xff]
    %v250 = vld [vmem:[#allocation2 + $0xe8] sm:$0xff]
    %v251 = vld [vmem:[#allocation2 + $0xf0] sm:$0xff]
    %v252 = vld [vmem:[#allocation2 + $0xf8] sm:$0xff]
    %v253 = vld [vmem:[#allocation2 + $0x100] sm:$0xff]
    %v254 = vld [vmem:[#allocation2 + $0x108] sm:$0xff]
    %v255 = vld [vmem:[#allocation2 + $0x110] sm:$0xff]
    %v256 = vld [vmem:[#allocation2 + $0x118] sm:$0xff]
    %v257 = vld [vmem:[#allocation2 + $0x120] sm:$0xff]
    %v258 = vld [vmem:[#allocation2 + $0x128] sm:$0xff]
    %v259 = vld [vmem:[#allocation2 + $0x130] sm:$0xff]
    %v260 = vld [vmem:[#allocation2 + $0x138] sm:$0xff]
    %v261 = vld [vmem:[#allocation2 + $0x140] sm:$0xff]
    %v262 = vld [vmem:[#allocation2 + $0x148] sm:$0xff]
    %v263 = vld [vmem:[#allocation2 + $0x150] sm:$0xff]
    %v264 = vld [vmem:[#allocation2 + $0x158] sm:$0xff]
    %v265 = vld [vmem:[#allocation2 + $0x160] sm:$0xff]
    %v266 = vld [vmem:[#allocation2 + $0x168] sm:$0xff]
    %v267 = vld [vmem:[#allocation2 + $0x170] sm:$0xff]
    %v268 = vld [vmem:[#allocation2 + $0x178] sm:$0xff]
    %v269 = vld [vmem:[#allocation2 + $0x180] sm:$0xff]
    %v270 = vld [vmem:[#allocation2 + $0x188] sm:$0xff]
    %v271 = vld [vmem:[#allocation2 + $0x190] sm:$0xff]
    %v272 = vld [vmem:[#allocation2 + $0x198] sm:$0xff]
    %v273 = vld [vmem:[#allocation2 + $0x1a0] sm:$0xff]
    %v274 = vld [vmem:[#allocation2 + $0x1a8] sm:$0xff]
    %v275 = vld [vmem:[#allocation2 + $0x1b0] sm:$0xff]
    %v276 = vld [vmem:[#allocation2 + $0x1b8] sm:$0xff]
    %v277 = vld [vmem:[#allocation2 + $0x1c0] sm:$0xff]
    %v278 = vld [vmem:[#allocation2 + $0x1c8] sm:$0xff]
    %v279 = vld [vmem:[#allocation2 + $0x1d0] sm:$0xff]
    %v280 = vld [vmem:[#allocation2 + $0x1d8] sm:$0xff]
    %v281 = vld [vmem:[#allocation2 + $0x1e0] sm:$0xff]
    %v282 = vld [vmem:[#allocation2 + $0x1e8] sm:$0xff]
    %v283 = vld [vmem:[#allocation2 + $0x1f0] sm:$0xff]
    %v284 = vld [vmem:[#allocation2 + $0x1f8] sm:$0xff]
    %v285 = vld [vmem:[%s6] sm:$0xf]
    %v287 = vperm.slane %v285, 0
    %v288 = vperm.slane %v285, 1
    %v289 = vperm.slane %v285, 2
    %v290 = vperm.slane %v285, 3
    %v359 = vunpack.c.l.b16 %v221
    %v360 = vunpack.c.h.b16 %v221
    %v361 = vunpack.c.l.b16 %v222
    %v362 = vunpack.c.h.b16 %v222
    %v363 = vunpack.c.l.b16 %v223
    %v364 = vunpack.c.h.b16 %v223
    %v365 = vunpack.c.l.b16 %v224
    %v366 = vunpack.c.h.b16 %v224
    %v367 = vunpack.c.l.b16 %v225
    %v368 = vunpack.c.h.b16 %v225
    %v369 = vunpack.c.l.b16 %v226
    %v370 = vunpack.c.h.b16 %v226
    %v371 = vunpack.c.l.b16 %v227
    %v372 = vunpack.c.h.b16 %v227
    %v373 = vunpack.c.l.b16 %v228
    %v374 = vunpack.c.h.b16 %v228
    %v375 = vunpack.c.l.b16 %v229
    %v376 = vunpack.c.h.b16 %v229
    %v377 = vunpack.c.l.b16 %v230
    %v378 = vunpack.c.h.b16 %v230
    %v379 = vunpack.c.l.b16 %v231
    %v380 = vunpack.c.h.b16 %v231
    %v381 = vunpack.c.l.b16 %v232
    %v382 = vunpack.c.h.b16 %v232
    %v383 = vunpack.c.l.b16 %v233
    %v384 = vunpack.c.h.b16 %v233
    %v385 = vunpack.c.l.b16 %v234
    %v386 = vunpack.c.h.b16 %v234
    %v387 = vunpack.c.l.b16 %v235
    %v388 = vunpack.c.h.b16 %v235
    %v389 = vunpack.c.l.b16 %v236
    %v390 = vunpack.c.h.b16 %v236
    %v391 = vunpack.c.l.b16 %v237
    %v392 = vunpack.c.h.b16 %v237
    %v393 = vunpack.c.l.b16 %v238
    %v394 = vunpack.c.h.b16 %v238
    %v395 = vunpack.c.l.b16 %v239
    %v396 = vunpack.c.h.b16 %v239
    %v397 = vunpack.c.l.b16 %v240
    %v398 = vunpack.c.h.b16 %v240
    %v399 = vunpack.c.l.b16 %v241
    %v400 = vunpack.c.h.b16 %v241
    %v401 = vunpack.c.l.b16 %v242
    %v402 = vunpack.c.h.b16 %v242
    %v403 = vunpack.c.l.b16 %v243
    %v404 = vunpack.c.h.b16 %v243
    %v405 = vunpack.c.l.b16 %v244
    %v406 = vunpack.c.h.b16 %v244
    %v407 = vunpack.c.l.b16 %v245
    %v408 = vunpack.c.h.b16 %v245
    %v409 = vunpack.c.l.b16 %v246
    %v410 = vunpack.c.h.b16 %v246
    %v411 = vunpack.c.l.b16 %v247
    %v412 = vunpack.c.h.b16 %v247
    %v413 = vunpack.c.l.b16 %v248
    %v414 = vunpack.c.h.b16 %v248
    %v415 = vunpack.c.l.b16 %v249
    %v416 = vunpack.c.h.b16 %v249
    %v417 = vunpack.c.l.b16 %v250
    %v418 = vunpack.c.h.b16 %v250
    %v419 = vunpack.c.l.b16 %v251
    %v420 = vunpack.c.h.b16 %v251
    %v421 = vunpack.c.l.b16 %v252
    %v422 = vunpack.c.h.b16 %v252
    %v423 = vunpack.c.l.b16 %v253
    %v424 = vunpack.c.h.b16 %v253
    %v425 = vunpack.c.l.b16 %v254
    %v426 = vunpack.c.h.b16 %v254
    %v427 = vunpack.c.l.b16 %v255
    %v428 = vunpack.c.h.b16 %v255
    %v429 = vunpack.c.l.b16 %v256
    %v430 = vunpack.c.h.b16 %v256
    %v431 = vunpack.c.l.b16 %v257
    %v432 = vunpack.c.h.b16 %v257
    %v433 = vunpack.c.l.b16 %v258
    %v434 = vunpack.c.h.b16 %v258
    %v435 = vunpack.c.l.b16 %v259
    %v436 = vunpack.c.h.b16 %v259
    %v437 = vunpack.c.l.b16 %v260
    %v438 = vunpack.c.h.b16 %v260
    %v439 = vunpack.c.l.b16 %v261
    %v440 = vunpack.c.h.b16 %v261
    %v441 = vunpack.c.l.b16 %v262
    %v442 = vunpack.c.h.b16 %v262
    %v443 = vunpack.c.l.b16 %v263
    %v444 = vunpack.c.h.b16 %v263
    %v445 = vunpack.c.l.b16 %v264
    %v446 = vunpack.c.h.b16 %v264
    %v447 = vunpack.c.l.b16 %v265
    %v448 = vunpack.c.h.b16 %v265
    %v449 = vunpack.c.l.b16 %v266
    %v450 = vunpack.c.h.b16 %v266
    %v451 = vunpack.c.l.b16 %v267
    %v452 = vunpack.c.h.b16 %v267
    %v453 = vunpack.c.l.b16 %v268
    %v454 = vunpack.c.h.b16 %v268
    %v455 = vunpack.c.l.b16 %v269
    %v456 = vunpack.c.h.b16 %v269
    %v457 = vunpack.c.l.b16 %v270
    %v458 = vunpack.c.h.b16 %v270
    %v459 = vunpack.c.l.b16 %v271
    %v460 = vunpack.c.h.b16 %v271
    %v461 = vunpack.c.l.b16 %v272
    %v462 = vunpack.c.h.b16 %v272
    %v463 = vunpack.c.l.b16 %v273
    %v464 = vunpack.c.h.b16 %v273
    %v465 = vunpack.c.l.b16 %v274
    %v466 = vunpack.c.h.b16 %v274
    %v467 = vunpack.c.l.b16 %v275
    %v468 = vunpack.c.h.b16 %v275
    %v469 = vunpack.c.l.b16 %v276
    %v470 = vunpack.c.h.b16 %v276
    %v471 = vunpack.c.l.b16 %v277
    %v472 = vunpack.c.h.b16 %v277
    %v473 = vunpack.c.l.b16 %v278
    %v474 = vunpack.c.h.b16 %v278
    %v475 = vunpack.c.l.b16 %v279
    %v476 = vunpack.c.h.b16 %v279
    %v477 = vunpack.c.l.b16 %v280
    %v478 = vunpack.c.h.b16 %v280
    %v479 = vunpack.c.l.b16 %v281
    %v480 = vunpack.c.h.b16 %v281
    %v481 = vunpack.c.l.b16 %v282
    %v482 = vunpack.c.h.b16 %v282
    %v483 = vunpack.c.l.b16 %v283
    %v484 = vunpack.c.h.b16 %v283
    %v485 = vunpack.c.l.b16 %v284
    %v486 = vunpack.c.h.b16 %v284
    %v487 = vpack.c.b16 %v363, %v359
    %v488 = vpack.c.b16 %v364, %v360
    %v489 = vpack.c.b16 %v365, %v361
    %v490 = vpack.c.b16 %v366, %v362
    %v491 = vpack.c.b16 %v371, %v367
    %v492 = vpack.c.b16 %v372, %v368
    %v493 = vpack.c.b16 %v373, %v369
    %v494 = vpack.c.b16 %v374, %v370
    %v495 = vpack.c.b16 %v379, %v375
    %v496 = vpack.c.b16 %v380, %v376
    %v497 = vpack.c.b16 %v381, %v377
    %v498 = vpack.c.b16 %v382, %v378
    %v499 = vpack.c.b16 %v387, %v383
    %v500 = vpack.c.b16 %v388, %v384
    %v501 = vpack.c.b16 %v389, %v385
    %v502 = vpack.c.b16 %v390, %v386
    %v503 = vpack.c.b16 %v395, %v391
    %v504 = vpack.c.b16 %v396, %v392
    %v505 = vpack.c.b16 %v397, %v393
    %v506 = vpack.c.b16 %v398, %v394
    %v507 = vpack.c.b16 %v403, %v399
    %v508 = vpack.c.b16 %v404, %v400
    %v509 = vpack.c.b16 %v405, %v401
    %v510 = vpack.c.b16 %v406, %v402
    %v511 = vpack.c.b16 %v411, %v407
    %v512 = vpack.c.b16 %v412, %v408
    %v513 = vpack.c.b16 %v413, %v409
    %v514 = vpack.c.b16 %v414, %v410
    %v515 = vpack.c.b16 %v419, %v415
    %v516 = vpack.c.b16 %v420, %v416
    %v517 = vpack.c.b16 %v421, %v417
    %v518 = vpack.c.b16 %v422, %v418
    %v519 = vpack.c.b16 %v427, %v423
    %v520 = vpack.c.b16 %v428, %v424
    %v521 = vpack.c.b16 %v429, %v425
    %v522 = vpack.c.b16 %v430, %v426
    %v523 = vpack.c.b16 %v435, %v431
    %v524 = vpack.c.b16 %v436, %v432
    %v525 = vpack.c.b16 %v437, %v433
    %v526 = vpack.c.b16 %v438, %v434
    %v527 = vpack.c.b16 %v443, %v439
    %v528 = vpack.c.b16 %v444, %v440
    %v529 = vpack.c.b16 %v445, %v441
    %v530 = vpack.c.b16 %v446, %v442
    %v531 = vpack.c.b16 %v451, %v447
    %v532 = vpack.c.b16 %v452, %v448
    %v533 = vpack.c.b16 %v453, %v449
    %v534 = vpack.c.b16 %v454, %v450
    %v535 = vpack.c.b16 %v459, %v455
    %v536 = vpack.c.b16 %v460, %v456
    %v537 = vpack.c.b16 %v461, %v457
    %v538 = vpack.c.b16 %v462, %v458
    %v539 = vpack.c.b16 %v467, %v463
    %v540 = vpack.c.b16 %v468, %v464
    %v541 = vpack.c.b16 %v469, %v465
    %v542 = vpack.c.b16 %v470, %v466
    %v543 = vpack.c.b16 %v475, %v471
    %v544 = vpack.c.b16 %v476, %v472
    %v545 = vpack.c.b16 %v477, %v473
    %v546 = vpack.c.b16 %v478, %v474
    %v547 = vpack.c.b16 %v483, %v479
    %v548 = vpack.c.b16 %v484, %v480
    %v549 = vpack.c.b16 %v485, %v481
    %v550 = vpack.c.b16 %v486, %v482
    %615 = vmatpush.bf16.msra.mxu0 %v515
    %616 = vmatpush.bf16.msra.mxu0 %v511
    %617 = vmatpush.bf16.msra.mxu0 %v507
    %618 = vmatpush.bf16.msra.mxu0 %v503
    %619 = vmatpush.bf16.msra.mxu0 %v499
    %620 = vmatpush.bf16.msra.mxu0 %v495
    %621 = vmatpush.bf16.msra.mxu0 %v491
    %622 = vmatpush.bf16.msra.mxu0 %v487
    %623 = vmatmul.bf16.gmra.mxu0 %v219
    %v624 = vpop.f32.mrf.mxu0
    %v625 = vadd.f32 %v287, %v624
    %v626 = vpop.f32.mrf.mxu0
    %v627 = vadd.f32 %v287, %v626
    %628 = vdwg.mxu0
    %629 = vmatpush.bf16.msra.mxu0 %v547
    %630 = vmatpush.bf16.msra.mxu0 %v543
    %631 = vmatpush.bf16.msra.mxu0 %v539
    %632 = vmatpush.bf16.msra.mxu0 %v535
    %633 = vmatpush.bf16.msra.mxu0 %v531
    %634 = vmatpush.bf16.msra.mxu0 %v527
    %635 = vmatpush.bf16.msra.mxu0 %v523
    %636 = vmatpush.bf16.msra.mxu0 %v519
    %637 = vmatmul.bf16.gmra.mxu0 %v220
    %v638 = vpop.f32.mrf.mxu0
    %v639 = vadd.f32 %v625, %v638
    %v640 = vpop.f32.mrf.mxu0
    %v641 = vadd.f32 %v627, %v640
    %642 = vdwg.mxu0
    %643 = vmatpush.bf16.msra.mxu0 %v516
    %644 = vmatpush.bf16.msra.mxu0 %v512
    %645 = vmatpush.bf16.msra.mxu0 %v508
    %646 = vmatpush.bf16.msra.mxu0 %v504
    %647 = vmatpush.bf16.msra.mxu0 %v500
    %648 = vmatpush.bf16.msra.mxu0 %v496
    %649 = vmatpush.bf16.msra.mxu0 %v492
    %650 = vmatpush.bf16.msra.mxu0 %v488
    %651 = vmatmul.bf16.gmra.mxu0 %v219
    %v652 = vpop.f32.mrf.mxu0
    %v653 = vadd.f32 %v288, %v652
    %v654 = vpop.f32.mrf.mxu0
    %v655 = vadd.f32 %v288, %v654
    %656 = vdwg.mxu0
    %657 = vmatpush.bf16.msra.mxu0 %v548
    %658 = vmatpush.bf16.msra.mxu0 %v544
    %659 = vmatpush.bf16.msra.mxu0 %v540
    %660 = vmatpush.bf16.msra.mxu0 %v536
    %661 = vmatpush.bf16.msra.mxu0 %v532
    %662 = vmatpush.bf16.msra.mxu0 %v528
    %663 = vmatpush.bf16.msra.mxu0 %v524
    %664 = vmatpush.bf16.msra.mxu0 %v520
    %665 = vmatmul.bf16.gmra.mxu0 %v220
    %v666 = vpop.f32.mrf.mxu0
    %v667 = vadd.f32 %v653, %v666
    %v668 = vpop.f32.mrf.mxu0
    %v669 = vadd.f32 %v655, %v668
    %670 = vdwg.mxu0
    %671 = vmatpush.bf16.msra.mxu0 %v517
    %672 = vmatpush.bf16.msra.mxu0 %v513
    %673 = vmatpush.bf16.msra.mxu0 %v509
    %674 = vmatpush.bf16.msra.mxu0 %v505
    %675 = vmatpush.bf16.msra.mxu0 %v501
    %676 = vmatpush.bf16.msra.mxu0 %v497
    %677 = vmatpush.bf16.msra.mxu0 %v493
    %678 = vmatpush.bf16.msra.mxu0 %v489
    %679 = vmatmul.bf16.gmra.mxu0 %v219
    %v680 = vpop.f32.mrf.mxu0
    %v681 = vadd.f32 %v289, %v680
    %v682 = vpop.f32.mrf.mxu0
    %v683 = vadd.f32 %v289, %v682
    %684 = vdwg.mxu0
    %685 = vmatpush.bf16.msra.mxu0 %v549
    %686 = vmatpush.bf16.msra.mxu0 %v545
    %687 = vmatpush.bf16.msra.mxu0 %v541
    %688 = vmatpush.bf16.msra.mxu0 %v537
    %689 = vmatpush.bf16.msra.mxu0 %v533
    %690 = vmatpush.bf16.msra.mxu0 %v529
    %691 = vmatpush.bf16.msra.mxu0 %v525
    %692 = vmatpush.bf16.msra.mxu0 %v521
    %693 = vmatmul.bf16.gmra.mxu0 %v220
    %v694 = vpop.f32.mrf.mxu0
    %v695 = vadd.f32 %v681, %v694
    %v696 = vpop.f32.mrf.mxu0
    %v697 = vadd.f32 %v683, %v696
    %698 = vdwg.mxu0
    %699 = vmatpush.bf16.msra.mxu0 %v518
    %700 = vmatpush.bf16.msra.mxu0 %v514
    %701 = vmatpush.bf16.msra.mxu0 %v510
    %702 = vmatpush.bf16.msra.mxu0 %v506
    %703 = vmatpush.bf16.msra.mxu0 %v502
    %704 = vmatpush.bf16.msra.mxu0 %v498
    %705 = vmatpush.bf16.msra.mxu0 %v494
    %706 = vmatpush.bf16.msra.mxu0 %v490
    %707 = vmatmul.bf16.gmra.mxu0 %v219
    %v708 = vpop.f32.mrf.mxu0
    %v709 = vadd.f32 %v290, %v708
    %v710 = vpop.f32.mrf.mxu0
    %v711 = vadd.f32 %v290, %v710
    %712 = vdwg.mxu0
    %713 = vmatpush.bf16.msra.mxu0 %v550
    %714 = vmatpush.bf16.msra.mxu0 %v546
    %715 = vmatpush.bf16.msra.mxu0 %v542
    %716 = vmatpush.bf16.msra.mxu0 %v538
    %717 = vmatpush.bf16.msra.mxu0 %v534
    %718 = vmatpush.bf16.msra.mxu0 %v530
    %719 = vmatpush.bf16.msra.mxu0 %v526
    %720 = vmatpush.bf16.msra.mxu0 %v522
    %721 = vmatmul.bf16.gmra.mxu0 %v220
    %v722 = vpop.f32.mrf.mxu0
    %v723 = vadd.f32 %v709, %v722
    %v724 = vpop.f32.mrf.mxu0
    %v725 = vadd.f32 %v711, %v724
    %726 = vdwg.mxu0
    %v727 = vmax.f32 %v639, 0.0
    %v728 = vmax.f32 %v667, 0.0
    %v729 = vmax.f32 %v695, 0.0
    %v730 = vmax.f32 %v723, 0.0
    %v731 = vmax.f32 %v641, 0.0
    %v732 = vmax.f32 %v669, 0.0
    %v733 = vmax.f32 %v697, 0.0
    %v734 = vmax.f32 %v725, 0.0
    %v735 = vld [vmem:[%s7] sm:$0xf]
    %v737 = vperm.slane %v735, 0
    %v738 = vperm.slane %v735, 1
    %v739 = vperm.slane %v735, 2
    %v740 = vperm.slane %v735, 3
    %v745 = vmul.f32 %v727, %v737
    %v746 = vmul.f32 %v728, %v738
    %v747 = vmul.f32 %v729, %v739
    %v748 = vmul.f32 %v730, %v740
    %v749 = vmul.f32 %v731, %v737
    %v750 = vmul.f32 %v732, %v738
    %v751 = vmul.f32 %v733, %v739
    %v752 = vmul.f32 %v734, %v740
    %v753 = vld [vmem:[%s8] sm:$0xf]
    %v755 = vperm.slane %v753, 0
    %v756 = vperm.slane %v753, 1
    %v757 = vperm.slane %v753, 2
    %v758 = vperm.slane %v753, 3
    %v763 = vadd.f32 %v745, %v755
    %v764 = vadd.f32 %v746, %v756
    %v765 = vadd.f32 %v747, %v757
    %v766 = vadd.f32 %v748, %v758
    %v767 = vadd.f32 %v749, %v755
    %v768 = vadd.f32 %v750, %v756
    %v769 = vadd.f32 %v751, %v757
    %v770 = vadd.f32 %v752, %v758
    %v771 = vmax.f32 %v763, %v765
    %v772 = vmax.f32 %v764, %v766
    %v773 = vmax.f32 %v767, %v769
    %v774 = vmax.f32 %v768, %v770
    %775 = vst [vmem:[%s9] sm:$0xff] %v771
    %776 = vst [vmem:[%s9 + $0x8] sm:$0xff] %v772
    %777 = vst [vmem:[%s9 + $0x10] sm:$0xff] %v773
    %778 = vst [vmem:[%s9 + $0x18] sm:$0xff] %v774
    // Predicated region
    $region42: #{cnn_lstm_forward.2} parent=1 // pred_check
      _
    $region43: #{cnn_lstm_forward.2} parent=1 // pred_check_branch
      %780 = sbr.rel (0) target = $region45
    $region44: #{cnn_lstm_forward.2} parent=1 // pred_region
      _
    $region45: #{cnn_lstm_forward.2} parent=1 // pred_fallthru
      _
    // Predicated region
    $region46: #{cnn_lstm_forward.2} parent=1 // pred_check
      _
    $region47: #{cnn_lstm_forward.2} parent=1 // pred_check_branch
      %782 = sbr.rel (0) target = $region49
    $region48: #{cnn_lstm_forward.2} parent=1 // pred_region
      _
    $region49: #{cnn_lstm_forward.2} parent=1 // pred_fallthru
      _
    %783 = vsyncpa [#allocation3], 1

// kernel: cnn_lstm_forward.3
$region0: #{cnn_lstm_forward.3}
  #allocation0 [shape = 'u32[]', space=smem, size = 0x4, offset = 0x4, fixed_abs, tag = 'smem constant byte address 0x4 - core index']
  #allocation1 [shape = 'u32[72,128]{1,0:T(1,128)}', space=vmem, size = 0x9000, scoped, tag = 'internal scratch']
  #allocation2 [shape = 'f32[64,32]{1,0:T(8,128)}', space=vmem, size = 0x8000, scoped, tag = 'scratch operand']
  #allocation3 [shape = 'f32[1,1]{1,0:T(1,128)S(1)}', space=vmem, size = 0x200, scoped, tag = 'scoped memory for cnn_lstm_forward.3']
  %s0 = inlined_call_operand.vmem [shape: f32[64,256], index: 0, kind: input, shape index: {}]
  %s1 = inlined_call_operand.vmem [shape: bf16[256,128], index: 1, kind: input, shape index: {}]
  %s2 = inlined_call_operand.vmem [shape: bf16[32,128], index: 2, kind: input, shape index: {}]
  %s3 = inlined_call_operand.vmem [shape: f32[1,128], index: 3, kind: input, shape index: {}]
  %s4 = inlined_call_operand.vmem [shape: bf16[32,128], index: 4, kind: input, shape index: {}]
  %s5 = inlined_call_operand.vmem [shape: bf16[32,128], index: 5, kind: input, shape index: {}]
  %s6 = inlined_call_operand.vmem [shape: f32[1,128], index: 6, kind: input, shape index: {}]
  %s7 = inlined_call_operand.vmem [shape: f32[1,32], index: 7, kind: input, shape index: {}]
  %s8 = inlined_call_operand.<no memory space> [shape: f32[1,1], index: 8, kind: input, shape index: {}]
  %s9 = inlined_call_operand.vmem [shape: f32[8,8], index: 9, kind: output, shape index: {}]
  %s10 = sld [smem:[#allocation0]]
  $region46: #{cnn_lstm_forward.3} parent=0
    _
  %s12 = ssub.s32 1, %s10
  %s13 = scalar_select 0, %s12, %s10
  %v14 = vstv %s8
  %15 = vst [vmem:[#allocation3] sm:$0x1] %v14
  // Predicated region
  $region2: #{cnn_lstm_forward.3} parent=0 // pred_check
    _
  $region3: #{cnn_lstm_forward.3} parent=0 // pred_check_branch
    %17 = sbr.rel (0) target = $region5
  $region4: #{cnn_lstm_forward.3} parent=0 // pred_region
    _
  $region5: #{cnn_lstm_forward.3} parent=0 // pred_fallthru
    _
  // Predicated region
  $region6: #{cnn_lstm_forward.3} parent=0 // pred_check
    _
  $region7: #{cnn_lstm_forward.3} parent=0 // pred_check_branch
    %19 = sbr.rel (0) target = $region9
  $region8: #{cnn_lstm_forward.3} parent=0 // pred_region
    _
  $region9: #{cnn_lstm_forward.3} parent=0 // pred_fallthru
    _
  // Predicated region
  $region10: #{cnn_lstm_forward.3} parent=0 // pred_check
    _
  $region11: #{cnn_lstm_forward.3} parent=0 // pred_check_branch
    %21 = sbr.rel (0) target = $region13
  $region12: #{cnn_lstm_forward.3} parent=0 // pred_region
    _
  $region13: #{cnn_lstm_forward.3} parent=0 // pred_fallthru
    _
  // Predicated region
  $region14: #{cnn_lstm_forward.3} parent=0 // pred_check
    _
  $region15: #{cnn_lstm_forward.3} parent=0 // pred_check_branch
    %23 = sbr.rel (0) target = $region17
  $region16: #{cnn_lstm_forward.3} parent=0 // pred_region
    _
  $region17: #{cnn_lstm_forward.3} parent=0 // pred_fallthru
    _
  // Predicated region
  $region18: #{cnn_lstm_forward.3} parent=0 // pred_check
    _
  $region19: #{cnn_lstm_forward.3} parent=0 // pred_check_branch
    %25 = sbr.rel (0) target = $region21
  $region20: #{cnn_lstm_forward.3} parent=0 // pred_region
    _
  $region21: #{cnn_lstm_forward.3} parent=0 // pred_fallthru
    _
  // Predicated region
  $region22: #{cnn_lstm_forward.3} parent=0 // pred_check
    _
  $region23: #{cnn_lstm_forward.3} parent=0 // pred_check_branch
    %27 = sbr.rel (0) target = $region25
  $region24: #{cnn_lstm_forward.3} parent=0 // pred_region
    _
  $region25: #{cnn_lstm_forward.3} parent=0 // pred_fallthru
    _
  // Predicated region
  $region26: #{cnn_lstm_forward.3} parent=0 // pred_check
    _
  $region27: #{cnn_lstm_forward.3} parent=0 // pred_check_branch
    %29 = sbr.rel (0) target = $region29
  $region28: #{cnn_lstm_forward.3} parent=0 // pred_region
    _
  $region29: #{cnn_lstm_forward.3} parent=0 // pred_fallthru
    _
  // Predicated region
  $region30: #{cnn_lstm_forward.3} parent=0 // pred_check
    _
  $region31: #{cnn_lstm_forward.3} parent=0 // pred_check_branch
    %31 = sbr.rel (0) target = $region33
  $region32: #{cnn_lstm_forward.3} parent=0 // pred_region
    _
  $region33: #{cnn_lstm_forward.3} parent=0 // pred_fallthru
    _
  // Predicated region
  $region34: #{cnn_lstm_forward.3} parent=0 // pred_check
    _
  $region35: #{cnn_lstm_forward.3} parent=0 // pred_check_branch
    %33 = sbr.rel (0) target = $region37
  $region36: #{cnn_lstm_forward.3} parent=0 // pred_region
    _
  $region37: #{cnn_lstm_forward.3} parent=0 // pred_fallthru
    _
  %v35 = vlaneseq
  %v36 = vand.u32 %v35, 127
  %vm37 = vcmp.ge.s32.totalorder %v36, 64
  %vm38 = vcmp.lt.s32.totalorder %v36, 96
  %vm39 = vmand %vm37, %vm38
  %v40 = vld [vmem:[%s1] sm:$0xf]
  %v41 = vld [vmem:[%s1 + $0x4] sm:$0xf]
  %v42 = vld [vmem:[%s1 + $0x8] sm:$0xf]
  %v43 = vld [vmem:[%s1 + $0xc] sm:$0xf]
  %v44 = vld [vmem:[%s1 + $0x10] sm:$0xf]
  %v45 = vld [vmem:[%s1 + $0x14] sm:$0xf]
  %v46 = vld [vmem:[%s1 + $0x18] sm:$0xf]
  %v47 = vld [vmem:[%s1 + $0x1c] sm:$0xf]
  %v48 = vld [vmem:[%s1 + $0x20] sm:$0xf]
  %v49 = vld [vmem:[%s1 + $0x24] sm:$0xf]
  %v50 = vld [vmem:[%s1 + $0x28] sm:$0xf]
  %v51 = vld [vmem:[%s1 + $0x2c] sm:$0xf]
  %v52 = vld [vmem:[%s1 + $0x30] sm:$0xf]
  %v53 = vld [vmem:[%s1 + $0x34] sm:$0xf]
  %v54 = vld [vmem:[%s1 + $0x38] sm:$0xf]
  %v55 = vld [vmem:[%s1 + $0x3c] sm:$0xf]
  %v56 = vld [vmem:[%s1 + $0x40] sm:$0xf]
  %v57 = vld [vmem:[%s1 + $0x44] sm:$0xf]
  %v58 = vld [vmem:[%s1 + $0x48] sm:$0xf]
  %v59 = vld [vmem:[%s1 + $0x4c] sm:$0xf]
  %v60 = vld [vmem:[%s1 + $0x50] sm:$0xf]
  %v61 = vld [vmem:[%s1 + $0x54] sm:$0xf]
  %v62 = vld [vmem:[%s1 + $0x58] sm:$0xf]
  %v63 = vld [vmem:[%s1 + $0x5c] sm:$0xf]
  %v64 = vld [vmem:[%s1 + $0x60] sm:$0xf]
  %v65 = vld [vmem:[%s1 + $0x64] sm:$0xf]
  %v66 = vld [vmem:[%s1 + $0x68] sm:$0xf]
  %v67 = vld [vmem:[%s1 + $0x6c] sm:$0xf]
  %v68 = vld [vmem:[%s1 + $0x70] sm:$0xf]
  %v69 = vld [vmem:[%s1 + $0x74] sm:$0xf]
  %v70 = vld [vmem:[%s1 + $0x78] sm:$0xf]
  %v71 = vld [vmem:[%s1 + $0x7c] sm:$0xf]
  %v72 = vld [vmem:[%s2] sm:$0xf]
  %v73 = vld [vmem:[%s2 + $0x4] sm:$0xf]
  %v74 = vld [vmem:[%s2 + $0x8] sm:$0xf]
  %v75 = vld [vmem:[%s2 + $0xc] sm:$0xf]
  %v76 = vld [vmem:[%s3] sm:$0x1]
  %v77 = vld [vmem:[%s0] sm:$0xff]
  %v78 = vld [vmem:[%s0 + $0x8] sm:$0xff]
  %v79 = vld [vmem:[%s0 + $0x10] sm:$0xff]
  %v80 = vld [vmem:[%s0 + $0x18] sm:$0xff]
  %v81 = vld [vmem:[%s0 + $0x20] sm:$0xff]
  %v82 = vld [vmem:[%s0 + $0x28] sm:$0xff]
  %v83 = vld [vmem:[%s0 + $0x30] sm:$0xff]
  %v84 = vld [vmem:[%s0 + $0x38] sm:$0xff]
  %v85 = vld [vmem:[%s0 + $0x40] sm:$0xff]
  %v86 = vld [vmem:[%s0 + $0x48] sm:$0xff]
  %v87 = vld [vmem:[%s0 + $0x50] sm:$0xff]
  %v88 = vld [vmem:[%s0 + $0x58] sm:$0xff]
  %v89 = vld [vmem:[%s0 + $0x60] sm:$0xff]
  %v90 = vld [vmem:[%s0 + $0x68] sm:$0xff]
  %v91 = vld [vmem:[%s0 + $0x70] sm:$0xff]
  %v92 = vld [vmem:[%s0 + $0x78] sm:$0xff]
  %v93 = vpack.c.bf16 %v79, %v77
  %v94 = vpack.c.bf16 %v80, %v78
  %v95 = vpack.c.bf16 %v83, %v81
  %v96 = vpack.c.bf16 %v84, %v82
  %v97 = vpack.c.bf16 %v87, %v85
  %v98 = vpack.c.bf16 %v88, %v86
  %v99 = vpack.c.bf16 %v91, %v89
  %v100 = vpack.c.bf16 %v92, %v90
  %v102 = vperm.slane %v76, 0
  %v136 = vunpack.c.l.b16 %v40
  %v137 = vunpack.c.l.b16 %v41
  %v138 = vunpack.c.l.b16 %v42
  %v139 = vunpack.c.l.b16 %v43
  %v140 = vunpack.c.l.b16 %v44
  %v141 = vunpack.c.l.b16 %v45
  %v142 = vunpack.c.l.b16 %v46
  %v143 = vunpack.c.l.b16 %v47
  %v144 = vunpack.c.l.b16 %v48
  %v145 = vunpack.c.l.b16 %v49
  %v146 = vunpack.c.l.b16 %v50
  %v147 = vunpack.c.l.b16 %v51
  %v148 = vunpack.c.l.b16 %v52
  %v149 = vunpack.c.l.b16 %v53
  %v150 = vunpack.c.l.b16 %v54
  %v151 = vunpack.c.l.b16 %v55
  %v152 = vunpack.c.l.b16 %v56
  %v153 = vunpack.c.l.b16 %v57
  %v154 = vunpack.c.l.b16 %v58
  %v155 = vunpack.c.l.b16 %v59
  %v156 = vunpack.c.l.b16 %v60
  %v157 = vunpack.c.l.b16 %v61
  %v158 = vunpack.c.l.b16 %v62
  %v159 = vunpack.c.l.b16 %v63
  %v160 = vunpack.c.l.b16 %v64
  %v161 = vunpack.c.l.b16 %v65
  %v162 = vunpack.c.l.b16 %v66
  %v163 = vunpack.c.l.b16 %v67
  %v164 = vunpack.c.l.b16 %v68
  %v165 = vunpack.c.l.b16 %v69
  %v166 = vunpack.c.l.b16 %v70
  %v167 = vunpack.c.l.b16 %v71
  %v168 = vpack.c.b16 %v137, %v136
  %v169 = vpack.c.b16 %v139, %v138
  %v170 = vpack.c.b16 %v141, %v140
  %v171 = vpack.c.b16 %v143, %v142
  %v172 = vpack.c.b16 %v145, %v144
  %v173 = vpack.c.b16 %v147, %v146
  %v174 = vpack.c.b16 %v149, %v148
  %v175 = vpack.c.b16 %v151, %v150
  %v176 = vpack.c.b16 %v153, %v152
  %v177 = vpack.c.b16 %v155, %v154
  %v178 = vpack.c.b16 %v157, %v156
  %v179 = vpack.c.b16 %v159, %v158
  %v180 = vpack.c.b16 %v161, %v160
  %v181 = vpack.c.b16 %v163, %v162
  %v182 = vpack.c.b16 %v165, %v164
  %v183 = vpack.c.b16 %v167, %v166
  %200 = vmatpush.bf16.msra.mxu0 %v175
  %201 = vmatpush.bf16.msra.mxu0 %v174
  %202 = vmatpush.bf16.msra.mxu0 %v173
  %203 = vmatpush.bf16.msra.mxu0 %v172
  %204 = vmatpush.bf16.msra.mxu0 %v171
  %205 = vmatpush.bf16.msra.mxu0 %v170
  %206 = vmatpush.bf16.msra.mxu0 %v169
  %207 = vmatpush.bf16.msra.mxu0 %v168
  %208 = vmatmul.bf16.gmra.mxu0 %v93
  %v209 = vpop.f32.mrf.mxu0
  %v210 = vadd.f32 %v102, %v209
  %v211 = vpop.f32.mrf.mxu0
  %v212 = vadd.f32 %v102, %v211
  %213 = vmatmul.bf16.gmra.mxu0 %v95
  %v214 = vpop.f32.mrf.mxu0
  %v215 = vadd.f32 %v102, %v214
  %v216 = vpop.f32.mrf.mxu0
  %v217 = vadd.f32 %v102, %v216
  %218 = vmatmul.bf16.gmra.mxu0 %v97
  %v219 = vpop.f32.mrf.mxu0
  %v220 = vadd.f32 %v102, %v219
  %v221 = vpop.f32.mrf.mxu0
  %v222 = vadd.f32 %v102, %v221
  %223 = vmatmul.bf16.gmra.mxu0 %v99
  %v224 = vpop.f32.mrf.mxu0
  %v225 = vadd.f32 %v102, %v224
  %v226 = vpop.f32.mrf.mxu0
  %v227 = vadd.f32 %v102, %v226
  %228 = vdwg.mxu0
  %229 = vmatpush.bf16.msra.mxu0 %v183
  %230 = vmatpush.bf16.msra.mxu0 %v182
  %231 = vmatpush.bf16.msra.mxu0 %v181
  %232 = vmatpush.bf16.msra.mxu0 %v180
  %233 = vmatpush.bf16.msra.mxu0 %v179
  %234 = vmatpush.bf16.msra.mxu0 %v178
  %235 = vmatpush.bf16.msra.mxu0 %v177
  %236 = vmatpush.bf16.msra.mxu0 %v176
  %237 = vmatmul.bf16.gmra.mxu0 %v94
  %v238 = vpop.f32.mrf.mxu0
  %v239 = vadd.f32 %v210, %v238
  %v240 = vpop.f32.mrf.mxu0
  %v241 = vadd.f32 %v212, %v240
  %242 = vmatmul.bf16.gmra.mxu0 %v96
  %v243 = vpop.f32.mrf.mxu0
  %v244 = vadd.f32 %v215, %v243
  %v245 = vpop.f32.mrf.mxu0
  %v246 = vadd.f32 %v217, %v245
  %247 = vmatmul.bf16.gmra.mxu0 %v98
  %v248 = vpop.f32.mrf.mxu0
  %v249 = vadd.f32 %v220, %v248
  %v250 = vpop.f32.mrf.mxu0
  %v251 = vadd.f32 %v222, %v250
  %252 = vmatmul.bf16.gmra.mxu0 %v100
  %v253 = vpop.f32.mrf.mxu0
  %v254 = vadd.f32 %v225, %v253
  %v255 = vpop.f32.mrf.mxu0
  %v256 = vadd.f32 %v227, %v255
  %257 = vdwg.mxu0
  %v262 = vunpack.c.l.b16 %v72
  %v263 = vunpack.c.l.b16 %v73
  %v264 = vunpack.c.l.b16 %v74
  %v265 = vunpack.c.l.b16 %v75
  %v266 = vpack.c.b16 %v263, %v262
  %v267 = vpack.c.b16 %v265, %v264
  %vm270 = vcmask 261120
  %v272 = vsel %vm270, 0, 0
  %274 = vmatpush.bf16.msra.mxu0 0
  %275 = vmatpush.bf16.msra.mxu0 0
  %276 = vmatpush.bf16.msra.mxu0 0
  %277 = vmatpush.bf16.msra.mxu0 0
  %278 = vmatpush.bf16.msra.mxu0 0
  %279 = vmatpush.bf16.msra.mxu0 0
  %280 = vmatpush.bf16.msra.mxu0 %v267
  %281 = vmatpush.bf16.msra.mxu0 %v266
  %282 = vmatmul.bf16.gmra.mxu0 %v272
  %v283 = vpop.f32.mrf.mxu0
  %v284 = vadd.f32 0.0, %v283
  %v285 = vpop.f32.mrf.mxu0
  %286 = vdwg.mxu0
  %v287 = vadd.f32 %v239, %v284
  %v288 = vmul.f32 %v287, 0.5
  %v289 = vsel %vm39, %v287, %v288
  %v290 = vtanh.pop %v289
  %v291 = vmul.f32 %v290, 0.5
  %v292 = vadd.f32 %v291, 0.5
  %v293 = vsel %vm39, %v290, %v292
  %v294 = vmul.f32 %v293, 0.0
  %296 = vrot.lane.b32.xlu0 %v293, 64
  %v297 = vpop.permute.xlu0 %296
  %v299 = vmul.f32 %v293, %v297
  %301 = vrot.lane.b32.xlu0 %v299, 32
  %v302 = vpop.permute.xlu0 %301
  %v304 = vadd.f32 %v294, %v302
  %v305 = vtanh.pop %v304
  %307 = vrot.lane.b32.xlu0 %v305, 64
  %v308 = vpop.permute.xlu0 %307
  %v310 = vmul.f32 %v293, %v308
  %312 = vrot.lane.b32.xlu0 %v310, 32
  %v313 = vpop.permute.xlu0 %312
  %315 = vst.msk [vmem:[#allocation2] sm:$0xff] %vm270, %v313
  %v316 = vpack.c.bf16 %v310, %v310
  %318 = vrot.lane.b32.xlu0 %v316, 32
  %v319 = vpop.permute.xlu0 %318
  %v321 = vsel %vm270, %v319, 0
  %323 = vmatpush.bf16.msra.mxu0 0
  %324 = vmatpush.bf16.msra.mxu0 0
  %325 = vmatpush.bf16.msra.mxu0 0
  %326 = vmatpush.bf16.msra.mxu0 0
  %327 = vmatpush.bf16.msra.mxu0 0
  %328 = vmatpush.bf16.msra.mxu0 0
  %329 = vmatpush.bf16.msra.mxu0 %v267
  %330 = vmatpush.bf16.msra.mxu0 %v266
  %331 = vmatmul.bf16.gmra.mxu0 %v321
  %v332 = vpop.f32.mrf.mxu0
  %v333 = vadd.f32 0.0, %v332
  %v334 = vpop.f32.mrf.mxu0
  %335 = vdwg.mxu0
  %v336 = vadd.f32 %v241, %v333
  %v337 = vmul.f32 %v336, 0.5
  %v338 = vsel %vm39, %v336, %v337
  %v339 = vtanh.pop %v338
  %v340 = vmul.f32 %v339, 0.5
  %v341 = vadd.f32 %v340, 0.5
  %v342 = vsel %vm39, %v339, %v341
  %v343 = vmul.f32 %v342, %v304
  %345 = vrot.lane.b32.xlu0 %v342, 64
  %v346 = vpop.permute.xlu0 %345
  %v348 = vmul.f32 %v342, %v346
  %350 = vrot.lane.b32.xlu0 %v348, 32
  %v351 = vpop.permute.xlu0 %350
  %v353 = vadd.f32 %v343, %v351
  %v354 = vtanh.pop %v353
  %356 = vrot.lane.b32.xlu0 %v354, 64
  %v357 = vpop.permute.xlu0 %356
  %v359 = vmul.f32 %v342, %v357
  %361 = vrot.lane.b32.xlu0 %v359, 32
  %v362 = vpop.permute.xlu0 %361
  %364 = vst.msk [vmem:[#allocation2 + $0x8] sm:$0xff] %vm270, %v362
  %v365 = vpack.c.bf16 %v359, %v359
  %367 = vrot.lane.b32.xlu0 %v365, 32
  %v368 = vpop.permute.xlu0 %367
  %v370 = vsel %vm270, %v368, 0
  %372 = vmatpush.bf16.msra.mxu0 0
  %373 = vmatpush.bf16.msra.mxu0 0
  %374 = vmatpush.bf16.msra.mxu0 0
  %375 = vmatpush.bf16.msra.mxu0 0
  %376 = vmatpush.bf16.msra.mxu0 0
  %377 = vmatpush.bf16.msra.mxu0 0
  %378 = vmatpush.bf16.msra.mxu0 %v267
  %379 = vmatpush.bf16.msra.mxu0 %v266
  %380 = vmatmul.bf16.gmra.mxu0 %v370
  %v381 = vpop.f32.mrf.mxu0
  %v382 = vadd.f32 0.0, %v381
  %v383 = vpop.f32.mrf.mxu0
  %384 = vdwg.mxu0
  %v385 = vadd.f32 %v244, %v382
  %v386 = vmul.f32 %v385, 0.5
  %v387 = vsel %vm39, %v385, %v386
  %v388 = vtanh.pop %v387
  %v389 = vmul.f32 %v388, 0.5
  %v390 = vadd.f32 %v389, 0.5
  %v391 = vsel %vm39, %v388, %v390
  %v392 = vmul.f32 %v391, %v353
  %394 = vrot.lane.b32.xlu0 %v391, 64
  %v395 = vpop.permute.xlu0 %394
  %v397 = vmul.f32 %v391, %v395
  %399 = vrot.lane.b32.xlu0 %v397, 32
  %v400 = vpop.permute.xlu0 %399
  %v402 = vadd.f32 %v392, %v400
  %v403 = vtanh.pop %v402
  %405 = vrot.lane.b32.xlu0 %v403, 64
  %v406 = vpop.permute.xlu0 %405
  %v408 = vmul.f32 %v391, %v406
  %410 = vrot.lane.b32.xlu0 %v408, 32
  %v411 = vpop.permute.xlu0 %410
  %413 = vst.msk [vmem:[#allocation2 + $0x10] sm:$0xff] %vm270, %v411
  %v414 = vpack.c.bf16 %v408, %v408
  %416 = vrot.lane.b32.xlu0 %v414, 32
  %v417 = vpop.permute.xlu0 %416
  %v419 = vsel %vm270, %v417, 0
  %421 = vmatpush.bf16.msra.mxu0 0
  %422 = vmatpush.bf16.msra.mxu0 0
  %423 = vmatpush.bf16.msra.mxu0 0
  %424 = vmatpush.bf16.msra.mxu0 0
  %425 = vmatpush.bf16.msra.mxu0 0
  %426 = vmatpush.bf16.msra.mxu0 0
  %427 = vmatpush.bf16.msra.mxu0 %v267
  %428 = vmatpush.bf16.msra.mxu0 %v266
  %429 = vmatmul.bf16.gmra.mxu0 %v419
  %v430 = vpop.f32.mrf.mxu0
  %v431 = vadd.f32 0.0, %v430
  %v432 = vpop.f32.mrf.mxu0
  %433 = vdwg.mxu0
  %v434 = vadd.f32 %v246, %v431
  %v435 = vmul.f32 %v434, 0.5
  %v436 = vsel %vm39, %v434, %v435
  %v437 = vtanh.pop %v436
  %v438 = vmul.f32 %v437, 0.5
  %v439 = vadd.f32 %v438, 0.5
  %v440 = vsel %vm39, %v437, %v439
  %v441 = vmul.f32 %v440, %v402
  %443 = vrot.lane.b32.xlu0 %v440, 64
  %v444 = vpop.permute.xlu0 %443
  %v446 = vmul.f32 %v440, %v444
  %448 = vrot.lane.b32.xlu0 %v446, 32
  %v449 = vpop.permute.xlu0 %448
  %v451 = vadd.f32 %v441, %v449
  %v452 = vtanh.pop %v451
  %454 = vrot.lane.b32.xlu0 %v452, 64
  %v455 = vpop.permute.xlu0 %454
  %v457 = vmul.f32 %v440, %v455
  %459 = vrot.lane.b32.xlu0 %v457, 32
  %v460 = vpop.permute.xlu0 %459
  %462 = vst.msk [vmem:[#allocation2 + $0x18] sm:$0xff] %vm270, %v460
  %v463 = vpack.c.bf16 %v457, %v457
  %465 = vrot.lane.b32.xlu0 %v463, 32
  %v466 = vpop.permute.xlu0 %465
  %v468 = vsel %vm270, %v466, 0
  %470 = vmatpush.bf16.msra.mxu0 0
  %471 = vmatpush.bf16.msra.mxu0 0
  %472 = vmatpush.bf16.msra.mxu0 0
  %473 = vmatpush.bf16.msra.mxu0 0
  %474 = vmatpush.bf16.msra.mxu0 0
  %475 = vmatpush.bf16.msra.mxu0 0
  %476 = vmatpush.bf16.msra.mxu0 %v267
  %477 = vmatpush.bf16.msra.mxu0 %v266
  %478 = vmatmul.bf16.gmra.mxu0 %v468
  %v479 = vpop.f32.mrf.mxu0
  %v480 = vadd.f32 0.0, %v479
  %v481 = vpop.f32.mrf.mxu0
  %482 = vdwg.mxu0
  %v483 = vadd.f32 %v249, %v480
  %v484 = vmul.f32 %v483, 0.5
  %v485 = vsel %vm39, %v483, %v484
  %v486 = vtanh.pop %v485
  %v487 = vmul.f32 %v486, 0.5
  %v488 = vadd.f32 %v487, 0.5
  %v489 = vsel %vm39, %v486, %v488
  %v490 = vmul.f32 %v489, %v451
  %492 = vrot.lane.b32.xlu0 %v489, 64
  %v493 = vpop.permute.xlu0 %492
  %v495 = vmul.f32 %v489, %v493
  %497 = vrot.lane.b32.xlu0 %v495, 32
  %v498 = vpop.permute.xlu0 %497
  %v500 = vadd.f32 %v490, %v498
  %v501 = vtanh.pop %v500
  %503 = vrot.lane.b32.xlu0 %v501, 64
  %v504 = vpop.permute.xlu0 %503
  %v506 = vmul.f32 %v489, %v504
  %508 = vrot.lane.b32.xlu0 %v506, 32
  %v509 = vpop.permute.xlu0 %508
  %511 = vst.msk [vmem:[#allocation2 + $0x20] sm:$0xff] %vm270, %v509
  %v512 = vpack.c.bf16 %v506, %v506
  %514 = vrot.lane.b32.xlu0 %v512, 32
  %v515 = vpop.permute.xlu0 %514
  %v517 = vsel %vm270, %v515, 0
  %519 = vmatpush.bf16.msra.mxu0 0
  %520 = vmatpush.bf16.msra.mxu0 0
  %521 = vmatpush.bf16.msra.mxu0 0
  %522 = vmatpush.bf16.msra.mxu0 0
  %523 = vmatpush.bf16.msra.mxu0 0
  %524 = vmatpush.bf16.msra.mxu0 0
  %525 = vmatpush.bf16.msra.mxu0 %v267
  %526 = vmatpush.bf16.msra.mxu0 %v266
  %527 = vmatmul.bf16.gmra.mxu0 %v517
  %v528 = vpop.f32.mrf.mxu0
  %v529 = vadd.f32 0.0, %v528
  %v530 = vpop.f32.mrf.mxu0
  %531 = vdwg.mxu0
  %v532 = vadd.f32 %v251, %v529
  %v533 = vmul.f32 %v532, 0.5
  %v534 = vsel %vm39, %v532, %v533
  %v535 = vtanh.pop %v534
  %v536 = vmul.f32 %v535, 0.5
  %v537 = vadd.f32 %v536, 0.5
  %v538 = vsel %vm39, %v535, %v537
  %v539 = vmul.f32 %v538, %v500
  %541 = vrot.lane.b32.xlu0 %v538, 64
  %v542 = vpop.permute.xlu0 %541
  %v544 = vmul.f32 %v538, %v542
  %546 = vrot.lane.b32.xlu0 %v544, 32
  %v547 = vpop.permute.xlu0 %546
  %v549 = vadd.f32 %v539, %v547
  %v550 = vtanh.pop %v549
  %552 = vrot.lane.b32.xlu0 %v550, 64
  %v553 = vpop.permute.xlu0 %552
  %v555 = vmul.f32 %v538, %v553
  %557 = vrot.lane.b32.xlu0 %v555, 32
  %v558 = vpop.permute.xlu0 %557
  %560 = vst.msk [vmem:[#allocation2 + $0x28] sm:$0xff] %vm270, %v558
  %v561 = vpack.c.bf16 %v555, %v555
  %563 = vrot.lane.b32.xlu0 %v561, 32
  %v564 = vpop.permute.xlu0 %563
  %v566 = vsel %vm270, %v564, 0
  %568 = vmatpush.bf16.msra.mxu0 0
  %569 = vmatpush.bf16.msra.mxu0 0
  %570 = vmatpush.bf16.msra.mxu0 0
  %571 = vmatpush.bf16.msra.mxu0 0
  %572 = vmatpush.bf16.msra.mxu0 0
  %573 = vmatpush.bf16.msra.mxu0 0
  %574 = vmatpush.bf16.msra.mxu0 %v267
  %575 = vmatpush.bf16.msra.mxu0 %v266
  %576 = vmatmul.bf16.gmra.mxu0 %v566
  %v577 = vpop.f32.mrf.mxu0
  %v578 = vadd.f32 0.0, %v577
  %v579 = vpop.f32.mrf.mxu0
  %580 = vdwg.mxu0
  %v581 = vadd.f32 %v254, %v578
  %v582 = vmul.f32 %v581, 0.5
  %v583 = vsel %vm39, %v581, %v582
  %v584 = vtanh.pop %v583
  %v585 = vmul.f32 %v584, 0.5
  %v586 = vadd.f32 %v585, 0.5
  %v587 = vsel %vm39, %v584, %v586
  %v588 = vmul.f32 %v587, %v549
  %590 = vrot.lane.b32.xlu0 %v587, 64
  %v591 = vpop.permute.xlu0 %590
  %v593 = vmul.f32 %v587, %v591
  %595 = vrot.lane.b32.xlu0 %v593, 32
  %v596 = vpop.permute.xlu0 %595
  %v598 = vadd.f32 %v588, %v596
  %v599 = vtanh.pop %v598
  %601 = vrot.lane.b32.xlu0 %v599, 64
  %v602 = vpop.permute.xlu0 %601
  %v604 = vmul.f32 %v587, %v602
  %606 = vrot.lane.b32.xlu0 %v604, 32
  %v607 = vpop.permute.xlu0 %606
  %609 = vst.msk [vmem:[#allocation2 + $0x30] sm:$0xff] %vm270, %v607
  %v610 = vpack.c.bf16 %v604, %v604
  %612 = vrot.lane.b32.xlu0 %v610, 32
  %v613 = vpop.permute.xlu0 %612
  %v615 = vsel %vm270, %v613, 0
  %617 = vmatpush.bf16.msra.mxu0 0
  %618 = vmatpush.bf16.msra.mxu0 0
  %619 = vmatpush.bf16.msra.mxu0 0
  %620 = vmatpush.bf16.msra.mxu0 0
  %621 = vmatpush.bf16.msra.mxu0 0
  %622 = vmatpush.bf16.msra.mxu0 0
  %623 = vmatpush.bf16.msra.mxu0 %v267
  %624 = vmatpush.bf16.msra.mxu0 %v266
  %625 = vmatmul.bf16.gmra.mxu0 %v615
  %v626 = vpop.f32.mrf.mxu0
  %v627 = vadd.f32 0.0, %v626
  %v628 = vpop.f32.mrf.mxu0
  %629 = vdwg.mxu0
  %v630 = vadd.f32 %v256, %v627
  %v631 = vmul.f32 %v630, 0.5
  %v632 = vsel %vm39, %v630, %v631
  %v633 = vtanh.pop %v632
  %v634 = vmul.f32 %v633, 0.5
  %v635 = vadd.f32 %v634, 0.5
  %v636 = vsel %vm39, %v633, %v635
  %v637 = vmul.f32 %v636, %v598
  %639 = vrot.lane.b32.xlu0 %v636, 64
  %v640 = vpop.permute.xlu0 %639
  %v642 = vmul.f32 %v636, %v640
  %644 = vrot.lane.b32.xlu0 %v642, 32
  %v645 = vpop.permute.xlu0 %644
  %v647 = vadd.f32 %v637, %v645
  %v648 = vtanh.pop %v647
  %650 = vrot.lane.b32.xlu0 %v648, 64
  %v651 = vpop.permute.xlu0 %650
  %v653 = vmul.f32 %v636, %v651
  %655 = vrot.lane.b32.xlu0 %v653, 32
  %v656 = vpop.permute.xlu0 %655
  %658 = vst.msk [vmem:[#allocation2 + $0x38] sm:$0xff] %vm270, %v656
  %v659 = vld [vmem:[%s4] sm:$0xf]
  %v660 = vld [vmem:[%s4 + $0x4] sm:$0xf]
  %v661 = vld [vmem:[%s4 + $0x8] sm:$0xf]
  %v662 = vld [vmem:[%s4 + $0xc] sm:$0xf]
  %v663 = vld [vmem:[%s5] sm:$0xf]
  %v664 = vld [vmem:[%s5 + $0x4] sm:$0xf]
  %v665 = vld [vmem:[%s5 + $0x8] sm:$0xf]
  %v666 = vld [vmem:[%s5 + $0xc] sm:$0xf]
  %v667 = vld [vmem:[%s6] sm:$0x1]
  %v668 = vld [vmem:[#allocation2] sm:$0xff]
  %v669 = vld [vmem:[#allocation2 + $0x8] sm:$0xff]
  %v670 = vld [vmem:[#allocation2 + $0x10] sm:$0xff]
  %v671 = vld [vmem:[#allocation2 + $0x18] sm:$0xff]
  %v672 = vld [vmem:[#allocation2 + $0x20] sm:$0xff]
  %v673 = vld [vmem:[#allocation2 + $0x28] sm:$0xff]
  %v674 = vld [vmem:[#allocation2 + $0x30] sm:$0xff]
  %v675 = vld [vmem:[#allocation2 + $0x38] sm:$0xff]
  %v676 = vpack.c.bf16 %v669, %v668
  %v677 = vpack.c.bf16 %v671, %v670
  %v678 = vpack.c.bf16 %v673, %v672
  %v679 = vpack.c.bf16 %v675, %v674
  %v681 = vperm.slane %v667, 0
  %v687 = vunpack.c.l.b16 %v659
  %v688 = vunpack.c.l.b16 %v660
  %v689 = vunpack.c.l.b16 %v661
  %v690 = vunpack.c.l.b16 %v662
  %v691 = vpack.c.b16 %v688, %v687
  %v692 = vpack.c.b16 %v690, %v689
  %v696 = vsel %vm270, %v676, 0
  %v699 = vsel %vm270, %v677, 0
  %v702 = vsel %vm270, %v678, 0
  %v705 = vsel %vm270, %v679, 0
  %707 = vmatpush.bf16.msra.mxu0 0
  %708 = vmatpush.bf16.msra.mxu0 0
  %709 = vmatpush.bf16.msra.mxu0 0
  %710 = vmatpush.bf16.msra.mxu0 0
  %711 = vmatpush.bf16.msra.mxu0 0
  %712 = vmatpush.bf16.msra.mxu0 0
  %713 = vmatpush.bf16.msra.mxu0 %v692
  %714 = vmatpush.bf16.msra.mxu0 %v691
  %715 = vmatmul.bf16.gmra.mxu0 %v696
  %v716 = vpop.f32.mrf.mxu0
  %v717 = vadd.f32 %v681, %v716
  %v718 = vpop.f32.mrf.mxu0
  %v719 = vadd.f32 %v681, %v718
  %720 = vmatmul.bf16.gmra.mxu0 %v699
  %v721 = vpop.f32.mrf.mxu0
  %v722 = vadd.f32 %v681, %v721
  %v723 = vpop.f32.mrf.mxu0
  %v724 = vadd.f32 %v681, %v723
  %725 = vmatmul.bf16.gmra.mxu0 %v702
  %v726 = vpop.f32.mrf.mxu0
  %v727 = vadd.f32 %v681, %v726
  %v728 = vpop.f32.mrf.mxu0
  %v729 = vadd.f32 %v681, %v728
  %730 = vmatmul.bf16.gmra.mxu0 %v705
  %v731 = vpop.f32.mrf.mxu0
  %v732 = vadd.f32 %v681, %v731
  %v733 = vpop.f32.mrf.mxu0
  %v734 = vadd.f32 %v681, %v733
  %735 = vdwg.mxu0
  %v740 = vunpack.c.l.b16 %v663
  %v741 = vunpack.c.l.b16 %v664
  %v742 = vunpack.c.l.b16 %v665
  %v743 = vunpack.c.l.b16 %v666
  %v744 = vpack.c.b16 %v741, %v740
  %v745 = vpack.c.b16 %v743, %v742
  %748 = vmatpush.bf16.msra.mxu0 0
  %749 = vmatpush.bf16.msra.mxu0 0
  %750 = vmatpush.bf16.msra.mxu0 0
  %751 = vmatpush.bf16.msra.mxu0 0
  %752 = vmatpush.bf16.msra.mxu0 0
  %753 = vmatpush.bf16.msra.mxu0 0
  %754 = vmatpush.bf16.msra.mxu0 %v745
  %755 = vmatpush.bf16.msra.mxu0 %v744
  %756 = vmatmul.bf16.gmra.mxu0 %v272
  %v757 = vpop.f32.mrf.mxu0
  %v758 = vadd.f32 0.0, %v757
  %v759 = vpop.f32.mrf.mxu0
  %760 = vdwg.mxu0
  %v761 = vadd.f32 %v717, %v758
  %v762 = vmul.f32 %v761, 0.5
  %v763 = vsel %vm39, %v761, %v762
  %v764 = vtanh.pop %v763
  %v765 = vmul.f32 %v764, 0.5
  %v766 = vadd.f32 %v765, 0.5
  %v767 = vsel %vm39, %v764, %v766
  %v768 = vmul.f32 %v767, 0.0
  %770 = vrot.lane.b32.xlu0 %v767, 64
  %v771 = vpop.permute.xlu0 %770
  %v773 = vmul.f32 %v767, %v771
  %775 = vrot.lane.b32.xlu0 %v773, 32
  %v776 = vpop.permute.xlu0 %775
  %v778 = vadd.f32 %v768, %v776
  %v779 = vtanh.pop %v778
  %781 = vrot.lane.b32.xlu0 %v779, 64
  %v782 = vpop.permute.xlu0 %781
  %v784 = vmul.f32 %v767, %v782
  %v785 = vld [vmem:[%s7] sm:$0x1]
  %v787 = vperm.slane %v785, 0
  %788 = vrot.lane.b32.xlu0 %v787, 96
  %v789 = vpop.permute.xlu0 %788
  %v791 = vmul.f32 %v784, %v789
  %793 = vrot.lane.b32.xlu0 %v791, 32
  %v794 = vpop.permute.xlu0 %793
  %v796 = vsel %vm270, %v794, 0.0
  %797 = vadd.xlane.f32.xlu0 %v796
  %v798 = vpop.xlane.xlu0 %797
  %v799 = vpack.c.bf16 %v784, %v784
  %801 = vrot.lane.b32.xlu0 %v799, 32
  %v802 = vpop.permute.xlu0 %801
  %v804 = vsel %vm270, %v802, 0
  %806 = vmatpush.bf16.msra.mxu0 0
  %807 = vmatpush.bf16.msra.mxu0 0
  %808 = vmatpush.bf16.msra.mxu0 0
  %809 = vmatpush.bf16.msra.mxu0 0
  %810 = vmatpush.bf16.msra.mxu0 0
  %811 = vmatpush.bf16.msra.mxu0 0
  %812 = vmatpush.bf16.msra.mxu0 %v745
  %813 = vmatpush.bf16.msra.mxu0 %v744
  %814 = vmatmul.bf16.gmra.mxu0 %v804
  %v815 = vpop.f32.mrf.mxu0
  %v816 = vadd.f32 0.0, %v815
  %v817 = vpop.f32.mrf.mxu0
  %818 = vdwg.mxu0
  %v819 = vadd.f32 %v719, %v816
  %v820 = vmul.f32 %v819, 0.5
  %v821 = vsel %vm39, %v819, %v820
  %v822 = vtanh.pop %v821
  %v823 = vmul.f32 %v822, 0.5
  %v824 = vadd.f32 %v823, 0.5
  %v825 = vsel %vm39, %v822, %v824
  %v826 = vmul.f32 %v825, %v778
  %828 = vrot.lane.b32.xlu0 %v825, 64
  %v829 = vpop.permute.xlu0 %828
  %v831 = vmul.f32 %v825, %v829
  %833 = vrot.lane.b32.xlu0 %v831, 32
  %v834 = vpop.permute.xlu0 %833
  %v836 = vadd.f32 %v826, %v834
  %v837 = vtanh.pop %v836
  %839 = vrot.lane.b32.xlu0 %v837, 64
  %v840 = vpop.permute.xlu0 %839
  %v842 = vmul.f32 %v825, %v840
  %v843 = vmul.f32 %v842, %v789
  %845 = vrot.lane.b32.xlu0 %v843, 32
  %v846 = vpop.permute.xlu0 %845
  %v848 = vsel %vm270, %v846, 0.0
  %849 = vadd.xlane.f32.xlu0 %v848
  %v850 = vpop.xlane.xlu0 %849
  %v851 = vpack.c.bf16 %v842, %v842
  %853 = vrot.lane.b32.xlu0 %v851, 32
  %v854 = vpop.permute.xlu0 %853
  %v856 = vsel %vm270, %v854, 0
  %858 = vmatpush.bf16.msra.mxu0 0
  %859 = vmatpush.bf16.msra.mxu0 0
  %860 = vmatpush.bf16.msra.mxu0 0
  %861 = vmatpush.bf16.msra.mxu0 0
  %862 = vmatpush.bf16.msra.mxu0 0
  %863 = vmatpush.bf16.msra.mxu0 0
  %864 = vmatpush.bf16.msra.mxu0 %v745
  %865 = vmatpush.bf16.msra.mxu0 %v744
  %866 = vmatmul.bf16.gmra.mxu0 %v856
  %v867 = vpop.f32.mrf.mxu0
  %v868 = vadd.f32 0.0, %v867
  %v869 = vpop.f32.mrf.mxu0
  %870 = vdwg.mxu0
  %v871 = vadd.f32 %v722, %v868
  %v872 = vmul.f32 %v871, 0.5
  %v873 = vsel %vm39, %v871, %v872
  %v874 = vtanh.pop %v873
  %v875 = vmul.f32 %v874, 0.5
  %v876 = vadd.f32 %v875, 0.5
  %v877 = vsel %vm39, %v874, %v876
  %v878 = vmul.f32 %v877, %v836
  %880 = vrot.lane.b32.xlu0 %v877, 64
  %v881 = vpop.permute.xlu0 %880
  %v883 = vmul.f32 %v877, %v881
  %885 = vrot.lane.b32.xlu0 %v883, 32
  %v886 = vpop.permute.xlu0 %885
  %v888 = vadd.f32 %v878, %v886
  %v889 = vtanh.pop %v888
  %891 = vrot.lane.b32.xlu0 %v889, 64
  %v892 = vpop.permute.xlu0 %891
  %v894 = vmul.f32 %v877, %v892
  %v895 = vmul.f32 %v894, %v789
  %897 = vrot.lane.b32.xlu0 %v895, 32
  %v898 = vpop.permute.xlu0 %897
  %v900 = vsel %vm270, %v898, 0.0
  %901 = vadd.xlane.f32.xlu0 %v900
  %v902 = vpop.xlane.xlu0 %901
  %v903 = vpack.c.bf16 %v894, %v894
  %905 = vrot.lane.b32.xlu0 %v903, 32
  %v906 = vpop.permute.xlu0 %905
  %v908 = vsel %vm270, %v906, 0
  %910 = vmatpush.bf16.msra.mxu0 0
  %911 = vmatpush.bf16.msra.mxu0 0
  %912 = vmatpush.bf16.msra.mxu0 0
  %913 = vmatpush.bf16.msra.mxu0 0
  %914 = vmatpush.bf16.msra.mxu0 0
  %915 = vmatpush.bf16.msra.mxu0 0
  %916 = vmatpush.bf16.msra.mxu0 %v745
  %917 = vmatpush.bf16.msra.mxu0 %v744
  %918 = vmatmul.bf16.gmra.mxu0 %v908
  %v919 = vpop.f32.mrf.mxu0
  %v920 = vadd.f32 0.0, %v919
  %v921 = vpop.f32.mrf.mxu0
  %922 = vdwg.mxu0
  %v923 = vadd.f32 %v724, %v920
  %v924 = vmul.f32 %v923, 0.5
  %v925 = vsel %vm39, %v923, %v924
  %v926 = vtanh.pop %v925
  %v927 = vmul.f32 %v926, 0.5
  %v928 = vadd.f32 %v927, 0.5
  %v929 = vsel %vm39, %v926, %v928
  %v930 = vmul.f32 %v929, %v888
  %932 = vrot.lane.b32.xlu0 %v929, 64
  %v933 = vpop.permute.xlu0 %932
  %v935 = vmul.f32 %v929, %v933
  %937 = vrot.lane.b32.xlu0 %v935, 32
  %v938 = vpop.permute.xlu0 %937
  %v940 = vadd.f32 %v930, %v938
  %v941 = vtanh.pop %v940
  %943 = vrot.lane.b32.xlu0 %v941, 64
  %v944 = vpop.permute.xlu0 %943
  %v946 = vmul.f32 %v929, %v944
  %v947 = vmul.f32 %v946, %v789
  %949 = vrot.lane.b32.xlu0 %v947, 32
  %v950 = vpop.permute.xlu0 %949
  %v952 = vsel %vm270, %v950, 0.0
  %953 = vadd.xlane.f32.xlu0 %v952
  %v954 = vpop.xlane.xlu0 %953
  %v955 = vpack.c.bf16 %v946, %v946
  %957 = vrot.lane.b32.xlu0 %v955, 32
  %v958 = vpop.permute.xlu0 %957
  %v960 = vsel %vm270, %v958, 0
  %962 = vmatpush.bf16.msra.mxu0 0
  %963 = vmatpush.bf16.msra.mxu0 0
  %964 = vmatpush.bf16.msra.mxu0 0
  %965 = vmatpush.bf16.msra.mxu0 0
  %966 = vmatpush.bf16.msra.mxu0 0
  %967 = vmatpush.bf16.msra.mxu0 0
  %968 = vmatpush.bf16.msra.mxu0 %v745
  %969 = vmatpush.bf16.msra.mxu0 %v744
  %970 = vmatmul.bf16.gmra.mxu0 %v960
  %v971 = vpop.f32.mrf.mxu0
  %v972 = vadd.f32 0.0, %v971
  %v973 = vpop.f32.mrf.mxu0
  %974 = vdwg.mxu0
  %v975 = vadd.f32 %v727, %v972
  %v976 = vmul.f32 %v975, 0.5
  %v977 = vsel %vm39, %v975, %v976
  %v978 = vtanh.pop %v977
  %v979 = vmul.f32 %v978, 0.5
  %v980 = vadd.f32 %v979, 0.5
  %v981 = vsel %vm39, %v978, %v980
  %v982 = vmul.f32 %v981, %v940
  %984 = vrot.lane.b32.xlu0 %v981, 64
  %v985 = vpop.permute.xlu0 %984
  %v987 = vmul.f32 %v981, %v985
  %989 = vrot.lane.b32.xlu0 %v987, 32
  %v990 = vpop.permute.xlu0 %989
  %v992 = vadd.f32 %v982, %v990
  %v993 = vtanh.pop %v992
  %995 = vrot.lane.b32.xlu0 %v993, 64
  %v996 = vpop.permute.xlu0 %995
  %v998 = vmul.f32 %v981, %v996
  %v999 = vmul.f32 %v998, %v789
  %1001 = vrot.lane.b32.xlu0 %v999, 32
  %v1002 = vpop.permute.xlu0 %1001
  %v1004 = vsel %vm270, %v1002, 0.0
  %1005 = vadd.xlane.f32.xlu0 %v1004
  %v1006 = vpop.xlane.xlu0 %1005
  %v1007 = vpack.c.bf16 %v998, %v998
  %1009 = vrot.lane.b32.xlu0 %v1007, 32
  %v1010 = vpop.permute.xlu0 %1009
  %v1012 = vsel %vm270, %v1010, 0
  %1014 = vmatpush.bf16.msra.mxu0 0
  %1015 = vmatpush.bf16.msra.mxu0 0
  %1016 = vmatpush.bf16.msra.mxu0 0
  %1017 = vmatpush.bf16.msra.mxu0 0
  %1018 = vmatpush.bf16.msra.mxu0 0
  %1019 = vmatpush.bf16.msra.mxu0 0
  %1020 = vmatpush.bf16.msra.mxu0 %v745
  %1021 = vmatpush.bf16.msra.mxu0 %v744
  %1022 = vmatmul.bf16.gmra.mxu0 %v1012
  %v1023 = vpop.f32.mrf.mxu0
  %v1024 = vadd.f32 0.0, %v1023
  %v1025 = vpop.f32.mrf.mxu0
  %1026 = vdwg.mxu0
  %v1027 = vadd.f32 %v729, %v1024
  %v1028 = vmul.f32 %v1027, 0.5
  %v1029 = vsel %vm39, %v1027, %v1028
  %v1030 = vtanh.pop %v1029
  %v1031 = vmul.f32 %v1030, 0.5
  %v1032 = vadd.f32 %v1031, 0.5
  %v1033 = vsel %vm39, %v1030, %v1032
  %v1034 = vmul.f32 %v1033, %v992
  %1036 = vrot.lane.b32.xlu0 %v1033, 64
  %v1037 = vpop.permute.xlu0 %1036
  %v1039 = vmul.f32 %v1033, %v1037
  %1041 = vrot.lane.b32.xlu0 %v1039, 32
  %v1042 = vpop.permute.xlu0 %1041
  %v1044 = vadd.f32 %v1034, %v1042
  %v1045 = vtanh.pop %v1044
  %1047 = vrot.lane.b32.xlu0 %v1045, 64
  %v1048 = vpop.permute.xlu0 %1047
  %v1050 = vmul.f32 %v1033, %v1048
  %v1051 = vmul.f32 %v1050, %v789
  %1053 = vrot.lane.b32.xlu0 %v1051, 32
  %v1054 = vpop.permute.xlu0 %1053
  %v1056 = vsel %vm270, %v1054, 0.0
  %1057 = vadd.xlane.f32.xlu0 %v1056
  %v1058 = vpop.xlane.xlu0 %1057
  %v1059 = vpack.c.bf16 %v1050, %v1050
  %1061 = vrot.lane.b32.xlu0 %v1059, 32
  %v1062 = vpop.permute.xlu0 %1061
  %v1064 = vsel %vm270, %v1062, 0
  %1066 = vmatpush.bf16.msra.mxu0 0
  %1067 = vmatpush.bf16.msra.mxu0 0
  %1068 = vmatpush.bf16.msra.mxu0 0
  %1069 = vmatpush.bf16.msra.mxu0 0
  %1070 = vmatpush.bf16.msra.mxu0 0
  %1071 = vmatpush.bf16.msra.mxu0 0
  %1072 = vmatpush.bf16.msra.mxu0 %v745
  %1073 = vmatpush.bf16.msra.mxu0 %v744
  %1074 = vmatmul.bf16.gmra.mxu0 %v1064
  %v1075 = vpop.f32.mrf.mxu0
  %v1076 = vadd.f32 0.0, %v1075
  %v1077 = vpop.f32.mrf.mxu0
  %1078 = vdwg.mxu0
  %v1079 = vadd.f32 %v732, %v1076
  %v1080 = vmul.f32 %v1079, 0.5
  %v1081 = vsel %vm39, %v1079, %v1080
  %v1082 = vtanh.pop %v1081
  %v1083 = vmul.f32 %v1082, 0.5
  %v1084 = vadd.f32 %v1083, 0.5
  %v1085 = vsel %vm39, %v1082, %v1084
  %v1086 = vmul.f32 %v1085, %v1044
  %1088 = vrot.lane.b32.xlu0 %v1085, 64
  %v1089 = vpop.permute.xlu0 %1088
  %v1091 = vmul.f32 %v1085, %v1089
  %1093 = vrot.lane.b32.xlu0 %v1091, 32
  %v1094 = vpop.permute.xlu0 %1093
  %v1096 = vadd.f32 %v1086, %v1094
  %v1097 = vtanh.pop %v1096
  %1099 = vrot.lane.b32.xlu0 %v1097, 64
  %v1100 = vpop.permute.xlu0 %1099
  %v1102 = vmul.f32 %v1085, %v1100
  %v1103 = vmul.f32 %v1102, %v789
  %1105 = vrot.lane.b32.xlu0 %v1103, 32
  %v1106 = vpop.permute.xlu0 %1105
  %v1108 = vsel %vm270, %v1106, 0.0
  %1109 = vadd.xlane.f32.xlu0 %v1108
  %v1110 = vpop.xlane.xlu0 %1109
  %v1111 = vpack.c.bf16 %v1102, %v1102
  %1113 = vrot.lane.b32.xlu0 %v1111, 32
  %v1114 = vpop.permute.xlu0 %1113
  %v1116 = vsel %vm270, %v1114, 0
  %1118 = vmatpush.bf16.msra.mxu0 0
  %1119 = vmatpush.bf16.msra.mxu0 0
  %1120 = vmatpush.bf16.msra.mxu0 0
  %1121 = vmatpush.bf16.msra.mxu0 0
  %1122 = vmatpush.bf16.msra.mxu0 0
  %1123 = vmatpush.bf16.msra.mxu0 0
  %1124 = vmatpush.bf16.msra.mxu0 %v745
  %1125 = vmatpush.bf16.msra.mxu0 %v744
  %1126 = vmatmul.bf16.gmra.mxu0 %v1116
  %v1127 = vpop.f32.mrf.mxu0
  %v1128 = vadd.f32 0.0, %v1127
  %v1129 = vpop.f32.mrf.mxu0
  %1130 = vdwg.mxu0
  %v1131 = vadd.f32 %v734, %v1128
  %v1132 = vmul.f32 %v1131, 0.5
  %v1133 = vsel %vm39, %v1131, %v1132
  %v1134 = vtanh.pop %v1133
  %v1135 = vmul.f32 %v1134, 0.5
  %v1136 = vadd.f32 %v1135, 0.5
  %v1137 = vsel %vm39, %v1134, %v1136
  %v1138 = vmul.f32 %v1137, %v1096
  %1140 = vrot.lane.b32.xlu0 %v1137, 64
  %v1141 = vpop.permute.xlu0 %1140
  %v1143 = vmul.f32 %v1137, %v1141
  %1145 = vrot.lane.b32.xlu0 %v1143, 32
  %v1146 = vpop.permute.xlu0 %1145
  %v1148 = vadd.f32 %v1138, %v1146
  %v1149 = vtanh.pop %v1148
  %1151 = vrot.lane.b32.xlu0 %v1149, 64
  %v1152 = vpop.permute.xlu0 %1151
  %v1154 = vmul.f32 %v1137, %v1152
  %v1155 = vmul.f32 %v1154, %v789
  %1157 = vrot.lane.b32.xlu0 %v1155, 32
  %v1158 = vpop.permute.xlu0 %1157
  %v1160 = vsel %vm270, %v1158, 0.0
  %1161 = vadd.xlane.f32.xlu0 %v1160
  %v1162 = vpop.xlane.xlu0 %1161
  %vm1163 = vcmask 7168
  %v1164 = vsel %vm1163, %v798, %v850
  %vm1165 = vcmask 15360
  %v1166 = vsel %vm1165, %v1164, %v902
  %vm1167 = vcmask 23552
  %v1168 = vsel %vm1167, %v1166, %v954
  %vm1169 = vcmask 31744
  %v1170 = vsel %vm1169, %v1168, %v1006
  %vm1171 = vcmask 39936
  %v1172 = vsel %vm1171, %v1170, %v1058
  %vm1173 = vcmask 48128
  %v1174 = vsel %vm1173, %v1172, %v1110
  %vm1175 = vcmask 56320
  %v1176 = vsel %vm1175, %v1174, %v1162
  %v1177 = vld [vmem:[#allocation3] sm:$0x1]
  %v1179 = vperm.slane %v1177, 0
  %1180 = vset.pattern.permute.xlu0 0
  %1181 = vperm.xlu0 %1180, %v1179
  %v1182 = vpop.permute.xlu0 %1181
  %v1184 = vadd.f32 %v1176, %v1182
  %vm1185 = vcmask 64512
  %1186 = vst.msk [vmem:[%s9] sm:$0xff] %vm1185, %v1184
  // Predicated region
  $region38: #{cnn_lstm_forward.3} parent=0 // pred_check
    _
  $region39: #{cnn_lstm_forward.3} parent=0 // pred_check_branch
    %1188 = sbr.rel (0) target = $region41
  $region40: #{cnn_lstm_forward.3} parent=0 // pred_region
    _
  $region41: #{cnn_lstm_forward.3} parent=0 // pred_fallthru
    _
  // Predicated region
  $region42: #{cnn_lstm_forward.3} parent=0 // pred_check
    _
  $region43: #{cnn_lstm_forward.3} parent=0 // pred_check_branch
    %1190 = sbr.rel (0) target = $region45
  $region44: #{cnn_lstm_forward.3} parent=0 // pred_region
    _
  $region45: #{cnn_lstm_forward.3} parent=0 // pred_fallthru
    _

</llo_original>
